<compile_context>
chip_gen: v5e
topology: v5e:2x2
jax: 0.10.0
libtpu: 0.0.40
codegen_flags: <defaults>
</compile_context>

<pallas_src>
import functools

import jax
import jax.numpy as jnp
from jax import lax
from jax.experimental import pallas as pl
from jax.experimental.pallas import tpu as pltpu

IMAGE_SIGMA = 0.02
PRIOR_LAMBDA = 10.0


# ---------------------------------------------------------------------------
# Per-generation defaults: (target bytes per input block, vmem_limit_bytes).
# v5e/v6e: 128 MiB VMEM, scoped default only 16/32 MiB -> bigger blocks and an
# explicitly raised limit.  v7x / unknown: 64 MiB VMEM -> smaller blocks, keep
# the default scoped limit.
# ---------------------------------------------------------------------------
def _chip_defaults():
    kind = ""
    try:
        kind = jax.devices()[0].device_kind.lower()
    except Exception:
        pass
    if "v5" in kind or "v6" in kind:
        return 4 << 20, 64 << 20
    return 2 << 20, None


def _pick_rows(total, lane, block_bytes, itemsize):
    """Rows (sublanes) per block: a multiple of 8, or the full extent."""
    target = max(1, int(block_bytes) // max(1, int(lane) * int(itemsize)))
    if target >= total:
        return total
    target = (target // 8) * 8
    if target < 8:
        return min(8, total)
    return target


def _masked_sum(x, row_ok, lane_ok):
    """sum(x) over rows/lanes where the predicates hold (selects, no float masks)."""
    if row_ok is not None and lane_ok is not None:
        pred = jnp.logical_and(row_ok, lane_ok)
    elif row_ok is not None:
        pred = row_ok
    elif lane_ok is not None:
        pred = lane_ok
    else:
        return jnp.sum(x)
    return jnp.sum(jnp.where(pred, x, 0.0))


# ---------------------------------------------------------------------------
# Reconstruction kernel: per-block partial sum of (fixed - warped)^2.
#   block: (rows_blk, H*W); output block: (1, 8, 128) partial tile.
# ---------------------------------------------------------------------------
def _recon_partials_kernel(f_ref, w_ref, out_ref, *, rows_blk, total_rows,
                           need_mask):
    i = pl.program_id(0)
    f = f_ref[...].astype(jnp.float32)
    w = w_ref[...].astype(jnp.float32)
    d = f - w
    sq = d * d
    row_ok = None
    if need_mask:
        row = lax.broadcasted_iota(jnp.int32, (rows_blk, 1), 0) + i * rows_blk
        row_ok = row < total_rows
    total = _masked_sum(sq, row_ok, None)
    out_ref[...] = jnp.broadcast_to(total, (1, 8, 128))


def _recon_sum(fixed2d, warped2d, block_bytes, vmem_limit):
    R, L = fixed2d.shape
    rows_blk = _pick_rows(R, L, block_bytes, fixed2d.dtype.itemsize)
    n_r = pl.cdiv(R, rows_blk)
    kernel = functools.partial(_recon_partials_kernel, rows_blk=rows_blk,
                               total_rows=R, need_mask=(R % rows_blk) != 0)
    cp = dict(dimension_semantics=("parallel",))
    if vmem_limit:
        cp["vmem_limit_bytes"] = int(vmem_limit)
    partials = pl.pallas_call(
        kernel,
        grid=(n_r,),
        in_specs=[pl.BlockSpec((rows_blk, L), lambda i: (i, 0)),
                  pl.BlockSpec((rows_blk, L), lambda i: (i, 0))],
        out_specs=pl.BlockSpec((1, 8, 128), lambda i: (i, 0, 0)),
        out_shape=jax.ShapeDtypeStruct((n_r, 8, 128), jnp.float32),
        compiler_params=pltpu.CompilerParams(**cp),
    )(fixed2d, warped2d)
    return jnp.sum(partials[:, 0, 0])


# ---------------------------------------------------------------------------
# KL kernel (one pyramid level): per (bc, d-chunk) block partial sums of
#   [ sum(s2), boundary-face sum of s2, sum(log s2), dz^2, dy^2, dx^2 ]
# block: (1, d_blk, H*W); grid = (B*3, n_d_chunks); d axis sequential so the
# previous chunk's last plane can be carried in VMEM scratch for the z-diff.
# ---------------------------------------------------------------------------
def _kl_partials_kernel(m_ref, s_ref, out_ref, prev_plane_ref, *,
                        D, H, W, d_blk, is_log_sigma, need_mask):
    d_step = pl.program_id(1)
    L = H * W

    m = m_ref[0].astype(jnp.float32)           # (d_blk, L)
    s = s_ref[0].astype(jnp.float32)           # (d_blk, L)

    drow = lax.broadcasted_iota(jnp.int32, (d_blk, 1), 0) + d_step * d_blk
    row_ok = (drow < D) if need_mask else None
    li = lax.broadcasted_iota(jnp.int32, (1, L), 1)
    wmod = li % W

    # ---- sigma-term pieces --------------------------------------------------
    if is_log_sigma:
        s2 = jnp.exp(s)        # s holds log_sigma: std^2 = exp(log_sigma)
        logs2 = s
    else:
        s2 = s * s
        logs2 = jnp.log(s2)

    s2v = jnp.where(row_ok, s2, 0.0) if row_ok is not None else s2
    sum_log = _masked_sum(logs2, row_ok, None)

    row_sums = jnp.sum(s2v, axis=1, keepdims=True)     # (d_blk, 1)
    col_sums = jnp.sum(s2v, axis=0, keepdims=True)     # (1, L)
    s_total = jnp.sum(row_sums)
    # six boundary-face sums (each face counted separately so degenerate dims
    # with size 1 are counted twice, matching the conv-based degree matrix)
    s_z = (jnp.sum(jnp.where(drow == 0, row_sums, 0.0))
           + jnp.sum(jnp.where(drow == D - 1, row_sums, 0.0)))
    s_y = (jnp.sum(jnp.where(li < W, col_sums, 0.0))
           + jnp.sum(jnp.where(li >= L - W, col_sums, 0.0)))
    s_x = (jnp.sum(jnp.where(wmod == 0, col_sums, 0.0))
           + jnp.sum(jnp.where(wmod == W - 1, col_sums, 0.0)))
    s_face = s_z + s_y + s_x

    # ---- TV (prec-term) partial sums ----------------------------------------
    dx = m - pltpu.roll(m, shift=1, axis=1)             # w-diff (lane roll)
    dx_sum = _masked_sum(dx * dx, row_ok, wmod != 0)

    dy = m - pltpu.roll(m, shift=W, axis=1)             # h-diff (lane roll)
    dy_sum = _masked_sum(dy * dy, row_ok, li >= W)

    dz = m - pltpu.roll(m, shift=1, axis=0)             # d-diff (sublane roll)
    local = lax.broadcasted_iota(jnp.int32, (d_blk, 1), 0)
    z_ok = local >= 1
    if row_ok is not None:
        z_ok = jnp.logical_and(z_ok, row_ok)
    dz_sum = jnp.sum(jnp.where(z_ok, dz * dz, 0.0))

    # chunk-boundary d-pair via the carried previous plane
    @pl.when(d_step == 0)
    def _():
        prev_plane_ref[...] = m[0:1, :]                 # boundary diff -> 0
    dzb = m[0:1, :] - prev_plane_ref[...]
    dz_sum = dz_sum + jnp.sum(dzb * dzb)
    prev_plane_ref[...] = m[d_blk - 1:d_blk, :]         # consumed only if a next chunk exists

    # ---- emit the six partial sums as one aligned (8,128) tile ---------------
    vals = (s_total, s_face, sum_log, dz_sum, dy_sum, dx_sum)
    ridx = lax.broadcasted_iota(jnp.int32, (8, 128), 0)
    tile = jnp.zeros((8, 128), jnp.float32)
    for k, v in enumerate(vals):
        tile = jnp.where(ridx == k, v, tile)
    out_ref[...] = tile[None, None]


def _kl_level(mean, sigma, prior_lambda, is_log_sigma, block_bytes, vmem_limit):
    B, C, D, H, W = mean.shape
    L = H * W
    bc = B * C
    m3 = mean.reshape(bc, D, L)     # lane-dense slabs; layout plumbing only
    s3 = sigma.reshape(bc, D, L)

    d_blk = _pick_rows(D, L, block_bytes, m3.dtype.itemsize)
    n_d = pl.cdiv(D, d_blk)
    kernel = functools.partial(_kl_partials_kernel, D=D, H=H, W=W, d_blk=d_blk,
                               is_log_sigma=is_log_sigma,
                               need_mask=(D % d_blk) != 0)
    cp = dict(dimension_semantics=("parallel", "arbitrary"))
    if vmem_limit:
        cp["vmem_limit_bytes"] = int(vmem_limit)
    partials = pl.pallas_call(
        kernel,
        grid=(bc, n_d),
        in_specs=[pl.BlockSpec((1, d_blk, L), lambda b, d: (b, d, 0)),
                  pl.BlockSpec((1, d_blk, L), lambda b, d: (b, d, 0))],
        out_specs=pl.BlockSpec((1, 1, 8, 128), lambda b, d: (b, d, 0, 0)),
        out_shape=jax.ShapeDtypeStruct((bc, n_d, 8, 128), jnp.float32),
        scratch_shapes=[pltpu.VMEM((1, L), jnp.float32)],
        compiler_params=pltpu.CompilerParams(**cp),
    )(m3, s3)

    sums = jnp.sum(partials[:, :, :, 0], axis=(0, 1))   # (8,) tiny combine in JAX
    s_total, s_face, sum_log = sums[0], sums[1], sums[2]
    dz_sum, dy_sum, dx_sum = sums[3], sums[4], sums[5]

    n = bc * D * H * W
    deg_s2_sum = 6.0 * s_total - s_face                 # degree matrix never built
    sigma_term = (prior_lambda * deg_s2_sum - sum_log) / n
    dz_mean = dz_sum / max(bc * (D - 1) * H * W, 1)
    dy_mean = dy_sum / max(bc * D * (H - 1) * W, 1)
    dx_mean = dx_sum / max(bc * D * H * (W - 1), 1)
    prec_term = prior_lambda * 0.5 * ((dx_mean + dy_mean + dz_mean) / 3.0)
    return 0.5 * 3.0 * (sigma_term + prec_term)


# ---------------------------------------------------------------------------
# Module-equivalent forward (reg='tv'; the original 'atv' branch calls
# adaptive_tv_loss_l2 with one arg and would raise, so 'tv' semantics are used).
# Returns device scalars (no host .item() sync) -> jit / grad friendly.
# ---------------------------------------------------------------------------
def miccai2018_loss(warped, fixed, means, stds, *,
                    image_sigma=IMAGE_SIGMA, prior_lambda=PRIOR_LAMBDA,
                    stds_are_log_sigma=False,
                    block_bytes=None, vmem_limit_bytes=None):
    assert fixed.shape == warped.shape
    B, C, D, H, W = fixed.shape
    auto_blk, auto_lim = _chip_defaults()
    if block_bytes is None:
        block_bytes = auto_blk
    if vmem_limit_bytes is None:
        vmem_limit_bytes = auto_lim

    f2 = fixed.reshape(B * C * D, H * W)
    w2 = warped.reshape(B * C * D, H * W)
    sq_sum = _recon_sum(f2, w2, block_bytes, vmem_limit_bytes)
    recon = (1.0 / (2.0 * image_sigma ** 2)) * sq_sum / (B * C * D * H * W)

    kl_total = jnp.float32(0.0)
    for m, s in zip(means, stds):
        assert m.shape == s.shape and m.shape[1] == 3
        kl_total = kl_total + _kl_level(m, s, prior_lambda, stds_are_log_sigma,
                                        block_bytes, vmem_limit_bytes)
    total = recon + kl_total
    return total, recon, kl_total


# ---------------------------------------------------------------------------
# Pure-JAX reference (mirrors the PyTorch module) — correctness check only.
# ---------------------------------------------------------------------------
def _degree_matrix_ref(D, H, W):
    ones = jnp.ones((D, H, W), jnp.float32)
    p = jnp.pad(ones, 1)
    return (p[0:D, 1:H + 1, 1:W + 1] + p[2:D + 2, 1:H + 1, 1:W + 1]
            + p[1:D + 1, 0:H, 1:W + 1] + p[1:D + 1, 2:H + 2, 1:W + 1]
            + p[1:D + 1, 1:H + 1, 0:W] + p[1:D + 1, 1:H + 1, 2:W + 2])


def reference_loss(warped, fixed, means, stds,
                   image_sigma=IMAGE_SIGMA, prior_lambda=PRIOR_LAMBDA):
    recon = 1.0 / (2.0 * image_sigma ** 2) * jnp.mean((fixed - warped) ** 2)
    kl_total = jnp.float32(0.0)
    for m, s in zip(means, stds):
        _, _, D, H, W = m.shape
        deg = _degree_matrix_ref(D, H, W)[None, None]
        s2 = s * s
        sigma_term = jnp.mean(prior_lambda * deg * s2 - jnp.log(s2))
        dz = jnp.mean((m[:, :, 1:] - m[:, :, :-1]) ** 2)
        dy = jnp.mean((m[:, :, :, 1:] - m[:, :, :, :-1]) ** 2)
        dx = jnp.mean((m[:, :, :, :, 1:] - m[:, :, :, :, :-1]) ** 2)
        prec_term = prior_lambda * 0.5 * ((dx + dy + dz) / 3.0)
        kl_total = kl_total + 0.5 * 3.0 * (sigma_term + prec_term)
    return recon + kl_total, recon, kl_total


# ---------------------------------------------------------------------------
if __name__ == "__main__":
    key = jax.random.PRNGKey(0)
    ks = jax.random.split(key, 6)

    B = 2
    warped = jax.random.normal(ks[0], (B, 1, 12, 16, 16), jnp.float32)
    fixed = jax.random.normal(ks[1], (B, 1, 12, 16, 16), jnp.float32)
    # two pyramid levels of (mean, std) flow-field statistics
    means = [0.1 * jax.random.normal(ks[2], (B, 3, 12, 16, 16), jnp.float32),
             0.1 * jax.random.normal(ks[3], (B, 3, 6, 8, 8), jnp.float32)]
    log_sigmas = [0.1 * jax.random.normal(ks[4], (B, 3, 12, 16, 16), jnp.float32),
                  0.1 * jax.random.normal(ks[5], (B, 3, 6, 8, 8), jnp.float32)]
    stds = [jnp.exp(0.5 * ls) for ls in log_sigmas]

    ref_total, ref_recon, ref_kl = reference_loss(warped, fixed, means, stds)
    ref_total = jax.block_until_ready(ref_total)

    def check(name, outs):
        total, recon, kl = [jax.block_until_ready(o) for o in outs]
        for got, want in ((total, ref_total), (recon, ref_recon), (kl, ref_kl)):
            err = abs(float(got) - float(want))
            tol = 1e-3 * max(1.0, abs(float(want)))
            assert err < tol, f"{name}: pallas={float(got)} ref={float(want)}"

    # 1) default auto-tiled path (blocks cover the whole arrays at toy sizes)
    check("auto", jax.jit(miccai2018_loss)(warped, fixed, means, stds))

    # 2) force tiny blocks to exercise the pipelined grid, the ragged last
    #    D-chunk masks, and the carried boundary plane for the z-diff.
    tiled = jax.jit(functools.partial(miccai2018_loss, block_bytes=8192))
    check("tiled", tiled(warped, fixed, means, stds))

    # 3) log_sigma input path (s2 = exp(log_sigma) in-kernel, no wrapper exp)
    logsig = jax.jit(functools.partial(miccai2018_loss, stds_are_log_sigma=True))
    check("log_sigma", logsig(warped, fixed, means, log_sigmas))

    print("KERNEL_OK")
</pallas_src>

<mosaic_0001>
module attributes {stable_mosaic.version = 11 : i64} {
  func.func @_kl_partials_kernel(%arg0: i32, %arg1: i32, %arg2: memref<1x6x64xf32, #tpu.memory_space<vmem>>, %arg3: memref<1x6x64xf32, #tpu.memory_space<vmem>>, %arg4: memref<1x1x8x128xf32, #tpu.memory_space<vmem>>, %arg5: memref<1x64xf32, #tpu.memory_space<vmem>>) attributes {dimension_semantics = [#tpu.dimension_semantics<parallel>, #tpu.dimension_semantics<arbitrary>], iteration_bounds = array<i64: 6, 1>, scalar_prefetch = 0 : i64, scratch_operands = 1 : i64, tpu.core_type = #tpu.core_type<tc>, window_params = [{transform_indices = @transform_0, window_bounds = array<i64: 1, 6, 64>}, {transform_indices = @transform_1, window_bounds = array<i64: 1, 6, 64>}, {transform_indices = @transform_2, window_bounds = array<i64: 1, 1, 8, 128>}]} {
    %c0 = arith.constant 0 : index
    %c0_0 = arith.constant 0 : index
    %c0_1 = arith.constant 0 : index
    %0 = vector.load %arg2[%c0, %c0_0, %c0_1] : memref<1x6x64xf32, #tpu.memory_space<vmem>>, vector<1x6x64xf32>
    %1 = vector.shape_cast %0 : vector<1x6x64xf32> to vector<6x64xf32>
    %c0_2 = arith.constant 0 : index
    %c0_3 = arith.constant 0 : index
    %c0_4 = arith.constant 0 : index
    %2 = vector.load %arg3[%c0_2, %c0_3, %c0_4] : memref<1x6x64xf32, #tpu.memory_space<vmem>>, vector<1x6x64xf32>
    %3 = vector.shape_cast %2 : vector<1x6x64xf32> to vector<6x64xf32>
    %4 = tpu.iota {dimensions = array<i32: 0>} : vector<6x1xi32>
    %c6_i32 = arith.constant 6 : i32
    %5 = arith.muli %arg1, %c6_i32 : i32
    %6 = vector.broadcast %5 : i32 to vector<6x1xi32>
    %7 = arith.addi %4, %6 : vector<6x1xi32>
    %8 = tpu.iota {dimensions = array<i32: 1>} : vector<1x64xi32>
    %c8_i32 = arith.constant 8 : i32
    %c0_i32 = arith.constant 0 : i32
    %9 = arith.cmpi eq, %c8_i32, %c0_i32 : i32
    %c1_i32 = arith.constant 1 : i32
    %10 = arith.select %9, %c1_i32, %c8_i32 : i32
    %11 = vector.broadcast %10 : i32 to vector<1x64xi32>
    %12 = arith.remsi %8, %11 : vector<1x64xi32>
    %c0_i32_5 = arith.constant 0 : i32
    %13 = vector.broadcast %c0_i32_5 : i32 to vector<1x64xi32>
    %14 = arith.cmpi ne, %12, %13 : vector<1x64xi32>
    %c0_i32_6 = arith.constant 0 : i32
    %15 = vector.broadcast %c0_i32_6 : i32 to vector<1x64xi32>
    %16 = arith.cmpi slt, %12, %15 : vector<1x64xi32>
    %c0_i32_7 = arith.constant 0 : i32
    %17 = arith.cmpi slt, %10, %c0_i32_7 : i32
    %18 = vector.broadcast %17 : i1 to vector<1x64xi1>
    %19 = vector.broadcast %18 : vector<1x64xi1> to vector<1x64xi1>
    %20 = arith.xori %16, %19 : vector<1x64xi1>
    %21 = arith.andi %20, %14 : vector<1x64xi1>
    %22 = vector.broadcast %10 : i32 to vector<1x64xi32>
    %23 = arith.addi %12, %22 : vector<1x64xi32>
    %24 = arith.select %21, %23, %12 : vector<1x64xi1>, vector<1x64xi32>
    %25 = arith.mulf %3, %3 : vector<6x64xf32>
    %26 = math.log %25 : vector<6x64xf32>
    %27 = vector.shape_cast %26 : vector<6x64xf32> to vector<1x6x64xf32>
    %cst = arith.constant dense<0.000000e+00> : vector<1xf32>
    %28 = vector.multi_reduction <add>, %27, %cst [1, 2] : vector<1x6x64xf32> to vector<1xf32>
    %29 = vector.shape_cast %28 : vector<1xf32> to vector<1x1x1xf32>
    %30 = vector.extract %29[0, 0, 0] : f32 from vector<1x1x1xf32>
    %cst_8 = arith.constant dense<0.000000e+00> : vector<6xf32>
    %31 = vector.multi_reduction <add>, %25, %cst_8 [1] : vector<6x64xf32> to vector<6xf32>
    %32 = vector.shape_cast %31 : vector<6xf32> to vector<6x1xf32>
    %cst_9 = arith.constant dense<0.000000e+00> : vector<64xf32>
    %33 = vector.multi_reduction <add>, %25, %cst_9 [0] : vector<6x64xf32> to vector<64xf32>
    %34 = vector.shape_cast %33 : vector<64xf32> to vector<1x64xf32>
    %35 = vector.shape_cast %32 : vector<6x1xf32> to vector<1x6x1xf32>
    %cst_10 = arith.constant dense<0.000000e+00> : vector<1xf32>
    %36 = vector.multi_reduction <add>, %35, %cst_10 [1, 2] : vector<1x6x1xf32> to vector<1xf32>
    %37 = vector.shape_cast %36 : vector<1xf32> to vector<1x1x1xf32>
    %38 = vector.extract %37[0, 0, 0] : f32 from vector<1x1x1xf32>
    %c0_i32_11 = arith.constant 0 : i32
    %39 = vector.broadcast %c0_i32_11 : i32 to vector<6x1xi32>
    %40 = arith.cmpi eq, %7, %39 : vector<6x1xi32>
    %cst_12 = arith.constant 0.000000e+00 : f32
    %41 = vector.broadcast %cst_12 : f32 to vector<6x1xf32>
    %42 = arith.select %40, %32, %41 : vector<6x1xi1>, vector<6x1xf32>
    %43 = vector.shape_cast %42 : vector<6x1xf32> to vector<1x6x1xf32>
    %cst_13 = arith.constant dense<0.000000e+00> : vector<1xf32>
    %44 = vector.multi_reduction <add>, %43, %cst_13 [1, 2] : vector<1x6x1xf32> to vector<1xf32>
    %45 = vector.shape_cast %44 : vector<1xf32> to vector<1x1x1xf32>
    %46 = vector.extract %45[0, 0, 0] : f32 from vector<1x1x1xf32>
    %c5_i32 = arith.constant 5 : i32
    %47 = vector.broadcast %c5_i32 : i32 to vector<6x1xi32>
    %48 = arith.cmpi eq, %7, %47 : vector<6x1xi32>
    %cst_14 = arith.constant 0.000000e+00 : f32
    %49 = vector.broadcast %cst_14 : f32 to vector<6x1xf32>
    %50 = arith.select %48, %32, %49 : vector<6x1xi1>, vector<6x1xf32>
    %51 = vector.shape_cast %50 : vector<6x1xf32> to vector<1x6x1xf32>
    %cst_15 = arith.constant dense<0.000000e+00> : vector<1xf32>
    %52 = vector.multi_reduction <add>, %51, %cst_15 [1, 2] : vector<1x6x1xf32> to vector<1xf32>
    %53 = vector.shape_cast %52 : vector<1xf32> to vector<1x1x1xf32>
    %54 = vector.extract %53[0, 0, 0] : f32 from vector<1x1x1xf32>
    %55 = arith.addf %46, %54 : f32
    %c8_i32_16 = arith.constant 8 : i32
    %56 = vector.broadcast %c8_i32_16 : i32 to vector<1x64xi32>
    %57 = arith.cmpi slt, %8, %56 : vector<1x64xi32>
    %cst_17 = arith.constant 0.000000e+00 : f32
    %58 = vector.broadcast %cst_17 : f32 to vector<1x64xf32>
    %59 = arith.select %57, %34, %58 : vector<1x64xi1>, vector<1x64xf32>
    %60 = vector.shape_cast %59 : vector<1x64xf32> to vector<1x1x64xf32>
    %cst_18 = arith.constant dense<0.000000e+00> : vector<1xf32>
    %61 = vector.multi_reduction <add>, %60, %cst_18 [1, 2] : vector<1x1x64xf32> to vector<1xf32>
    %62 = vector.shape_cast %61 : vector<1xf32> to vector<1x1x1xf32>
    %63 = vector.extract %62[0, 0, 0] : f32 from vector<1x1x1xf32>
    %c56_i32 = arith.constant 56 : i32
    %64 = vector.broadcast %c56_i32 : i32 to vector<1x64xi32>
    %65 = arith.cmpi sge, %8, %64 : vector<1x64xi32>
    %cst_19 = arith.constant 0.000000e+00 : f32
    %66 = vector.broadcast %cst_19 : f32 to vector<1x64xf32>
    %67 = arith.select %65, %34, %66 : vector<1x64xi1>, vector<1x64xf32>
    %68 = vector.shape_cast %67 : vector<1x64xf32> to vector<1x1x64xf32>
    %cst_20 = arith.constant dense<0.000000e+00> : vector<1xf32>
    %69 = vector.multi_reduction <add>, %68, %cst_20 [1, 2] : vector<1x1x64xf32> to vector<1xf32>
    %70 = vector.shape_cast %69 : vector<1xf32> to vector<1x1x1xf32>
    %71 = vector.extract %70[0, 0, 0] : f32 from vector<1x1x1xf32>
    %72 = arith.addf %63, %71 : f32
    %c0_i32_21 = arith.constant 0 : i32
    %73 = vector.broadcast %c0_i32_21 : i32 to vector<1x64xi32>
    %74 = arith.cmpi eq, %24, %73 : vector<1x64xi32>
    %cst_22 = arith.constant 0.000000e+00 : f32
    %75 = vector.broadcast %cst_22 : f32 to vector<1x64xf32>
    %76 = arith.select %74, %34, %75 : vector<1x64xi1>, vector<1x64xf32>
    %77 = vector.shape_cast %76 : vector<1x64xf32> to vector<1x1x64xf32>
    %cst_23 = arith.constant dense<0.000000e+00> : vector<1xf32>
    %78 = vector.multi_reduction <add>, %77, %cst_23 [1, 2] : vector<1x1x64xf32> to vector<1xf32>
    %79 = vector.shape_cast %78 : vector<1xf32> to vector<1x1x1xf32>
    %80 = vector.extract %79[0, 0, 0] : f32 from vector<1x1x1xf32>
    %c7_i32 = arith.constant 7 : i32
    %81 = vector.broadcast %c7_i32 : i32 to vector<1x64xi32>
    %82 = arith.cmpi eq, %24, %81 : vector<1x64xi32>
    %cst_24 = arith.constant 0.000000e+00 : f32
    %83 = vector.broadcast %cst_24 : f32 to vector<1x64xf32>
    %84 = arith.select %82, %34, %83 : vector<1x64xi1>, vector<1x64xf32>
    %85 = vector.shape_cast %84 : vector<1x64xf32> to vector<1x1x64xf32>
    %cst_25 = arith.constant dense<0.000000e+00> : vector<1xf32>
    %86 = vector.multi_reduction <add>, %85, %cst_25 [1, 2] : vector<1x1x64xf32> to vector<1xf32>
    %87 = vector.shape_cast %86 : vector<1xf32> to vector<1x1x1xf32>
    %88 = vector.extract %87[0, 0, 0] : f32 from vector<1x1x1xf32>
    %89 = arith.addf %80, %88 : f32
    %90 = arith.addf %55, %72 : f32
    %91 = arith.addf %90, %89 : f32
    %c1_i32_26 = arith.constant 1 : i32
    %92 = tpu.dynamic_rotate %1 by %c1_i32_26 dim 1 : vector<6x64xf32>, i32 -> vector<6x64xf32>
    %93 = arith.subf %1, %92 : vector<6x64xf32>
    %94 = arith.mulf %93, %93 : vector<6x64xf32>
    %c0_i32_27 = arith.constant 0 : i32
    %95 = vector.broadcast %c0_i32_27 : i32 to vector<1x64xi32>
    %96 = arith.cmpi ne, %24, %95 : vector<1x64xi32>
    %cst_28 = arith.constant 0.000000e+00 : f32
    %97 = vector.shape_cast %96 : vector<1x64xi1> to vector<1x64xi1>
    %98 = vector.broadcast %97 : vector<1x64xi1> to vector<6x64xi1>
    %99 = vector.broadcast %cst_28 : f32 to vector<6x64xf32>
    %100 = arith.select %98, %94, %99 : vector<6x64xi1>, vector<6x64xf32>
    %101 = vector.shape_cast %100 : vector<6x64xf32> to vector<1x6x64xf32>
    %cst_29 = arith.constant dense<0.000000e+00> : vector<1xf32>
    %102 = vector.multi_reduction <add>, %101, %cst_29 [1, 2] : vector<1x6x64xf32> to vector<1xf32>
    %103 = vector.shape_cast %102 : vector<1xf32> to vector<1x1x1xf32>
    %104 = vector.extract %103[0, 0, 0] : f32 from vector<1x1x1xf32>
    %c8_i32_30 = arith.constant 8 : i32
    %105 = tpu.dynamic_rotate %1 by %c8_i32_30 dim 1 : vector<6x64xf32>, i32 -> vector<6x64xf32>
    %106 = arith.subf %1, %105 : vector<6x64xf32>
    %107 = arith.mulf %106, %106 : vector<6x64xf32>
    %c8_i32_31 = arith.constant 8 : i32
    %108 = vector.broadcast %c8_i32_31 : i32 to vector<1x64xi32>
    %109 = arith.cmpi sge, %8, %108 : vector<1x64xi32>
    %cst_32 = arith.constant 0.000000e+00 : f32
    %110 = vector.shape_cast %109 : vector<1x64xi1> to vector<1x64xi1>
    %111 = vector.broadcast %110 : vector<1x64xi1> to vector<6x64xi1>
    %112 = vector.broadcast %cst_32 : f32 to vector<6x64xf32>
    %113 = arith.select %111, %107, %112 : vector<6x64xi1>, vector<6x64xf32>
    %114 = vector.shape_cast %113 : vector<6x64xf32> to vector<1x6x64xf32>
    %cst_33 = arith.constant dense<0.000000e+00> : vector<1xf32>
    %115 = vector.multi_reduction <add>, %114, %cst_33 [1, 2] : vector<1x6x64xf32> to vector<1xf32>
    %116 = vector.shape_cast %115 : vector<1xf32> to vector<1x1x1xf32>
    %117 = vector.extract %116[0, 0, 0] : f32 from vector<1x1x1xf32>
    %c1_i32_34 = arith.constant 1 : i32
    %118 = tpu.dynamic_rotate %1 by %c1_i32_34 dim 0 : vector<6x64xf32>, i32 -> vector<6x64xf32>
    %119 = arith.subf %1, %118 : vector<6x64xf32>
    %120 = tpu.iota {dimensions = array<i32: 0>} : vector<6x1xi32>
    %c1_i32_35 = arith.constant 1 : i32
    %121 = vector.broadcast %c1_i32_35 : i32 to vector<6x1xi32>
    %122 = arith.cmpi sge, %120, %121 : vector<6x1xi32>
    %123 = arith.mulf %119, %119 : vector<6x64xf32>
    %cst_36 = arith.constant 0.000000e+00 : f32
    %124 = vector.shape_cast %122 : vector<6x1xi1> to vector<6x1xi1>
    %125 = vector.broadcast %124 : vector<6x1xi1> to vector<6x64xi1>
    %126 = vector.broadcast %cst_36 : f32 to vector<6x64xf32>
    %127 = arith.select %125, %123, %126 : vector<6x64xi1>, vector<6x64xf32>
    %128 = vector.shape_cast %127 : vector<6x64xf32> to vector<1x6x64xf32>
    %cst_37 = arith.constant dense<0.000000e+00> : vector<1xf32>
    %129 = vector.multi_reduction <add>, %128, %cst_37 [1, 2] : vector<1x6x64xf32> to vector<1xf32>
    %130 = vector.shape_cast %129 : vector<1xf32> to vector<1x1x1xf32>
    %131 = vector.extract %130[0, 0, 0] : f32 from vector<1x1x1xf32>
    %c0_i32_38 = arith.constant 0 : i32
    %132 = arith.cmpi eq, %arg1, %c0_i32_38 : i32
    %133 = arith.extui %132 : i1 to i32
    %c0_i32_39 = arith.constant 0 : i32
    %134 = arith.cmpi ne, %133, %c0_i32_39 : i32
    scf.if %134 {
      %174 = vector.extract_strided_slice %1 {offsets = [0, 0], sizes = [1, 64], strides = [1, 1]} : vector<6x64xf32> to vector<1x64xf32>
      %c0_53 = arith.constant 0 : index
      %c0_54 = arith.constant 0 : index
      %175 = vector.load %arg5[%c0_53, %c0_54] : memref<1x64xf32, #tpu.memory_space<vmem>>, vector<1x64xf32>
      tpu.vector_store %arg5[%c0_53, %c0_54], %174 {strides = array<i32>} : memref<1x64xf32, #tpu.memory_space<vmem>>, vector<1x64xf32>,
    } else {
    }
    %135 = vector.extract_strided_slice %1 {offsets = [0, 0], sizes = [1, 64], strides = [1, 1]} : vector<6x64xf32> to vector<1x64xf32>
    %c0_40 = arith.constant 0 : index
    %c0_41 = arith.constant 0 : index
    %136 = vector.load %arg5[%c0_40, %c0_41] : memref<1x64xf32, #tpu.memory_space<vmem>>, vector<1x64xf32>
    %137 = arith.subf %135, %136 : vector<1x64xf32>
    %138 = arith.mulf %137, %137 : vector<1x64xf32>
    %139 = vector.shape_cast %138 : vector<1x64xf32> to vector<1x1x64xf32>
    %cst_42 = arith.constant dense<0.000000e+00> : vector<1xf32>
    %140 = vector.multi_reduction <add>, %139, %cst_42 [1, 2] : vector<1x1x64xf32> to vector<1xf32>
    %141 = vector.shape_cast %140 : vector<1xf32> to vector<1x1x1xf32>
    %142 = vector.extract %141[0, 0, 0] : f32 from vector<1x1x1xf32>
    %143 = arith.addf %131, %142 : f32
    %144 = vector.extract_strided_slice %1 {offsets = [5, 0], sizes = [1, 64], strides = [1, 1]} : vector<6x64xf32> to vector<1x64xf32>
    %c0_43 = arith.constant 0 : index
    %c0_44 = arith.constant 0 : index
    %145 = vector.load %arg5[%c0_43, %c0_44] : memref<1x64xf32, #tpu.memory_space<vmem>>, vector<1x64xf32>
    tpu.vector_store %arg5[%c0_43, %c0_44], %144 {strides = array<i32>} : memref<1x64xf32, #tpu.memory_space<vmem>>, vector<1x64xf32>,
    %146 = tpu.iota {dimensions = array<i32: 0>} : vector<8x128xi32>
    %cst_45 = arith.constant 0.000000e+00 : f32
    %147 = vector.broadcast %cst_45 : f32 to vector<8x128xf32>
    %c0_i32_46 = arith.constant 0 : i32
    %148 = vector.broadcast %c0_i32_46 : i32 to vector<8x128xi32>
    %149 = arith.cmpi eq, %146, %148 : vector<8x128xi32>
    %150 = vector.broadcast %38 : f32 to vector<8x128xf32>
    %151 = arith.select %149, %150, %147 : vector<8x128xi1>, vector<8x128xf32>
    %c1_i32_47 = arith.constant 1 : i32
    %152 = vector.broadcast %c1_i32_47 : i32 to vector<8x128xi32>
    %153 = arith.cmpi eq, %146, %152 : vector<8x128xi32>
    %154 = vector.broadcast %91 : f32 to vector<8x128xf32>
    %155 = arith.select %153, %154, %151 : vector<8x128xi1>, vector<8x128xf32>
    %c2_i32 = arith.constant 2 : i32
    %156 = vector.broadcast %c2_i32 : i32 to vector<8x128xi32>
    %157 = arith.cmpi eq, %146, %156 : vector<8x128xi32>
    %158 = vector.broadcast %30 : f32 to vector<8x128xf32>
    %159 = arith.select %157, %158, %155 : vector<8x128xi1>, vector<8x128xf32>
    %c3_i32 = arith.constant 3 : i32
    %160 = vector.broadcast %c3_i32 : i32 to vector<8x128xi32>
    %161 = arith.cmpi eq, %146, %160 : vector<8x128xi32>
    %162 = vector.broadcast %143 : f32 to vector<8x128xf32>
    %163 = arith.select %161, %162, %159 : vector<8x128xi1>, vector<8x128xf32>
    %c4_i32 = arith.constant 4 : i32
    %164 = vector.broadcast %c4_i32 : i32 to vector<8x128xi32>
    %165 = arith.cmpi eq, %146, %164 : vector<8x128xi32>
    %166 = vector.broadcast %117 : f32 to vector<8x128xf32>
    %167 = arith.select %165, %166, %163 : vector<8x128xi1>, vector<8x128xf32>
    %c5_i32_48 = arith.constant 5 : i32
    %168 = vector.broadcast %c5_i32_48 : i32 to vector<8x128xi32>
    %169 = arith.cmpi eq, %146, %168 : vector<8x128xi32>
    %170 = vector.broadcast %104 : f32 to vector<8x128xf32>
    %171 = arith.select %169, %170, %167 : vector<8x128xi1>, vector<8x128xf32>
    %172 = vector.shape_cast %171 : vector<8x128xf32> to vector<1x1x8x128xf32>
    %c0_49 = arith.constant 0 : index
    %c0_50 = arith.constant 0 : index
    %c0_51 = arith.constant 0 : index
    %c0_52 = arith.constant 0 : index
    %173 = vector.load %arg4[%c0_49, %c0_50, %c0_51, %c0_52] : memref<1x1x8x128xf32, #tpu.memory_space<vmem>>, vector<1x1x8x128xf32>
    tpu.vector_store %arg4[%c0_49, %c0_50, %c0_51, %c0_52], %172 {strides = array<i32>} : memref<1x1x8x128xf32, #tpu.memory_space<vmem>>, vector<1x1x8x128xf32>,
    return
  }
  func.func @transform_0(%arg0: i32, %arg1: i32) -> (i32, i32, i32) {
    %c0_i32 = arith.constant 0 : i32
    %c0_i32_0 = arith.constant 0 : i32
    return %arg0, %arg1, %c0_i32 : i32, i32, i32
  }
  func.func @transform_1(%arg0: i32, %arg1: i32) -> (i32, i32, i32) {
    %c0_i32 = arith.constant 0 : i32
    %c0_i32_0 = arith.constant 0 : i32
    return %arg0, %arg1, %c0_i32 : i32, i32, i32
  }
  func.func @transform_2(%arg0: i32, %arg1: i32) -> (i32, i32, i32, i32) {
    %c0_i32 = arith.constant 0 : i32
    %c0_i32_0 = arith.constant 0 : i32
    %c0_i32_1 = arith.constant 0 : i32
    return %arg0, %arg1, %c0_i32, %c0_i32_0 : i32, i32, i32, i32
  }
}

module attributes {stable_mosaic.version = 11 : i64} {
  func.func @_kl_partials_kernel(%arg0: i32, %arg1: i32, %arg2: memref<1x12x256xf32, #tpu.memory_space<vmem>>, %arg3: memref<1x12x256xf32, #tpu.memory_space<vmem>>, %arg4: memref<1x1x8x128xf32, #tpu.memory_space<vmem>>, %arg5: memref<1x256xf32, #tpu.memory_space<vmem>>) attributes {dimension_semantics = [#tpu.dimension_semantics<parallel>, #tpu.dimension_semantics<arbitrary>], iteration_bounds = array<i64: 6, 1>, scalar_prefetch = 0 : i64, scratch_operands = 1 : i64, tpu.core_type = #tpu.core_type<tc>, window_params = [{transform_indices = @transform_0, window_bounds = array<i64: 1, 12, 256>}, {transform_indices = @transform_1, window_bounds = array<i64: 1, 12, 256>}, {transform_indices = @transform_2, window_bounds = array<i64: 1, 1, 8, 128>}]} {
    %c0 = arith.constant 0 : index
    %c0_0 = arith.constant 0 : index
    %c0_1 = arith.constant 0 : index
    %0 = vector.load %arg2[%c0, %c0_0, %c0_1] : memref<1x12x256xf32, #tpu.memory_space<vmem>>, vector<1x12x256xf32>
    %1 = vector.shape_cast %0 : vector<1x12x256xf32> to vector<12x256xf32>
    %c0_2 = arith.constant 0 : index
    %c0_3 = arith.constant 0 : index
    %c0_4 = arith.constant 0 : index
    %2 = vector.load %arg3[%c0_2, %c0_3, %c0_4] : memref<1x12x256xf32, #tpu.memory_space<vmem>>, vector<1x12x256xf32>
    %3 = vector.shape_cast %2 : vector<1x12x256xf32> to vector<12x256xf32>
    %4 = tpu.iota {dimensions = array<i32: 0>} : vector<12x1xi32>
    %c12_i32 = arith.constant 12 : i32
    %5 = arith.muli %arg1, %c12_i32 : i32
    %6 = vector.broadcast %5 : i32 to vector<12x1xi32>
    %7 = arith.addi %4, %6 : vector<12x1xi32>
    %8 = tpu.iota {dimensions = array<i32: 1>} : vector<1x256xi32>
    %c16_i32 = arith.constant 16 : i32
    %c0_i32 = arith.constant 0 : i32
    %9 = arith.cmpi eq, %c16_i32, %c0_i32 : i32
    %c1_i32 = arith.constant 1 : i32
    %10 = arith.select %9, %c1_i32, %c16_i32 : i32
    %11 = vector.broadcast %10 : i32 to vector<1x256xi32>
    %12 = arith.remsi %8, %11 : vector<1x256xi32>
    %c0_i32_5 = arith.constant 0 : i32
    %13 = vector.broadcast %c0_i32_5 : i32 to vector<1x256xi32>
    %14 = arith.cmpi ne, %12, %13 : vector<1x256xi32>
    %c0_i32_6 = arith.constant 0 : i32
    %15 = vector.broadcast %c0_i32_6 : i32 to vector<1x256xi32>
    %16 = arith.cmpi slt, %12, %15 : vector<1x256xi32>
    %c0_i32_7 = arith.constant 0 : i32
    %17 = arith.cmpi slt, %10, %c0_i32_7 : i32
    %18 = vector.broadcast %17 : i1 to vector<1x256xi1>
    %19 = vector.broadcast %18 : vector<1x256xi1> to vector<1x256xi1>
    %20 = arith.xori %16, %19 : vector<1x256xi1>
    %21 = arith.andi %20, %14 : vector<1x256xi1>
    %22 = vector.broadcast %10 : i32 to vector<1x256xi32>
    %23 = arith.addi %12, %22 : vector<1x256xi32>
    %24 = arith.select %21, %23, %12 : vector<1x256xi1>, vector<1x256xi32>
    %25 = arith.mulf %3, %3 : vector<12x256xf32>
    %26 = math.log %25 : vector<12x256xf32>
    %27 = vector.shape_cast %26 : vector<12x256xf32> to vector<1x12x256xf32>
    %cst = arith.constant dense<0.000000e+00> : vector<1xf32>
    %28 = vector.multi_reduction <add>, %27, %cst [1, 2] : vector<1x12x256xf32> to vector<1xf32>
    %29 = vector.shape_cast %28 : vector<1xf32> to vector<1x1x1xf32>
    %30 = vector.extract %29[0, 0, 0] : f32 from vector<1x1x1xf32>
    %cst_8 = arith.constant dense<0.000000e+00> : vector<12xf32>
    %31 = vector.multi_reduction <add>, %25, %cst_8 [1] : vector<12x256xf32> to vector<12xf32>
    %32 = vector.shape_cast %31 : vector<12xf32> to vector<12x1xf32>
    %cst_9 = arith.constant dense<0.000000e+00> : vector<256xf32>
    %33 = vector.multi_reduction <add>, %25, %cst_9 [0] : vector<12x256xf32> to vector<256xf32>
    %34 = vector.shape_cast %33 : vector<256xf32> to vector<1x256xf32>
    %35 = vector.shape_cast %32 : vector<12x1xf32> to vector<1x12x1xf32>
    %cst_10 = arith.constant dense<0.000000e+00> : vector<1xf32>
    %36 = vector.multi_reduction <add>, %35, %cst_10 [1, 2] : vector<1x12x1xf32> to vector<1xf32>
    %37 = vector.shape_cast %36 : vector<1xf32> to vector<1x1x1xf32>
    %38 = vector.extract %37[0, 0, 0] : f32 from vector<1x1x1xf32>
    %c0_i32_11 = arith.constant 0 : i32
    %39 = vector.broadcast %c0_i32_11 : i32 to vector<12x1xi32>
    %40 = arith.cmpi eq, %7, %39 : vector<12x1xi32>
    %cst_12 = arith.constant 0.000000e+00 : f32
    %41 = vector.broadcast %cst_12 : f32 to vector<12x1xf32>
    %42 = arith.select %40, %32, %41 : vector<12x1xi1>, vector<12x1xf32>
    %43 = vector.shape_cast %42 : vector<12x1xf32> to vector<1x12x1xf32>
    %cst_13 = arith.constant dense<0.000000e+00> : vector<1xf32>
    %44 = vector.multi_reduction <add>, %43, %cst_13 [1, 2] : vector<1x12x1xf32> to vector<1xf32>
    %45 = vector.shape_cast %44 : vector<1xf32> to vector<1x1x1xf32>
    %46 = vector.extract %45[0, 0, 0] : f32 from vector<1x1x1xf32>
    %c11_i32 = arith.constant 11 : i32
    %47 = vector.broadcast %c11_i32 : i32 to vector<12x1xi32>
    %48 = arith.cmpi eq, %7, %47 : vector<12x1xi32>
    %cst_14 = arith.constant 0.000000e+00 : f32
    %49 = vector.broadcast %cst_14 : f32 to vector<12x1xf32>
    %50 = arith.select %48, %32, %49 : vector<12x1xi1>, vector<12x1xf32>
    %51 = vector.shape_cast %50 : vector<12x1xf32> to vector<1x12x1xf32>
    %cst_15 = arith.constant dense<0.000000e+00> : vector<1xf32>
    %52 = vector.multi_reduction <add>, %51, %cst_15 [1, 2] : vector<1x12x1xf32> to vector<1xf32>
    %53 = vector.shape_cast %52 : vector<1xf32> to vector<1x1x1xf32>
    %54 = vector.extract %53[0, 0, 0] : f32 from vector<1x1x1xf32>
    %55 = arith.addf %46, %54 : f32
    %c16_i32_16 = arith.constant 16 : i32
    %56 = vector.broadcast %c16_i32_16 : i32 to vector<1x256xi32>
    %57 = arith.cmpi slt, %8, %56 : vector<1x256xi32>
    %cst_17 = arith.constant 0.000000e+00 : f32
    %58 = vector.broadcast %cst_17 : f32 to vector<1x256xf32>
    %59 = arith.select %57, %34, %58 : vector<1x256xi1>, vector<1x256xf32>
    %60 = vector.shape_cast %59 : vector<1x256xf32> to vector<1x1x256xf32>
    %cst_18 = arith.constant dense<0.000000e+00> : vector<1xf32>
    %61 = vector.multi_reduction <add>, %60, %cst_18 [1, 2] : vector<1x1x256xf32> to vector<1xf32>
    %62 = vector.shape_cast %61 : vector<1xf32> to vector<1x1x1xf32>
    %63 = vector.extract %62[0, 0, 0] : f32 from vector<1x1x1xf32>
    %c240_i32 = arith.constant 240 : i32
    %64 = vector.broadcast %c240_i32 : i32 to vector<1x256xi32>
    %65 = arith.cmpi sge, %8, %64 : vector<1x256xi32>
    %cst_19 = arith.constant 0.000000e+00 : f32
    %66 = vector.broadcast %cst_19 : f32 to vector<1x256xf32>
    %67 = arith.select %65, %34, %66 : vector<1x256xi1>, vector<1x256xf32>
    %68 = vector.shape_cast %67 : vector<1x256xf32> to vector<1x1x256xf32>
    %cst_20 = arith.constant dense<0.000000e+00> : vector<1xf32>
    %69 = vector.multi_reduction <add>, %68, %cst_20 [1, 2] : vector<1x1x256xf32> to vector<1xf32>
    %70 = vector.shape_cast %69 : vector<1xf32> to vector<1x1x1xf32>
    %71 = vector.extract %70[0, 0, 0] : f32 from vector<1x1x1xf32>
    %72 = arith.addf %63, %71 : f32
    %c0_i32_21 = arith.constant 0 : i32
    %73 = vector.broadcast %c0_i32_21 : i32 to vector<1x256xi32>
    %74 = arith.cmpi eq, %24, %73 : vector<1x256xi32>
    %cst_22 = arith.constant 0.000000e+00 : f32
    %75 = vector.broadcast %cst_22 : f32 to vector<1x256xf32>
    %76 = arith.select %74, %34, %75 : vector<1x256xi1>, vector<1x256xf32>
    %77 = vector.shape_cast %76 : vector<1x256xf32> to vector<1x1x256xf32>
    %cst_23 = arith.constant dense<0.000000e+00> : vector<1xf32>
    %78 = vector.multi_reduction <add>, %77, %cst_23 [1, 2] : vector<1x1x256xf32> to vector<1xf32>
    %79 = vector.shape_cast %78 : vector<1xf32> to vector<1x1x1xf32>
    %80 = vector.extract %79[0, 0, 0] : f32 from vector<1x1x1xf32>
    %c15_i32 = arith.constant 15 : i32
    %81 = vector.broadcast %c15_i32 : i32 to vector<1x256xi32>
    %82 = arith.cmpi eq, %24, %81 : vector<1x256xi32>
    %cst_24 = arith.constant 0.000000e+00 : f32
    %83 = vector.broadcast %cst_24 : f32 to vector<1x256xf32>
    %84 = arith.select %82, %34, %83 : vector<1x256xi1>, vector<1x256xf32>
    %85 = vector.shape_cast %84 : vector<1x256xf32> to vector<1x1x256xf32>
    %cst_25 = arith.constant dense<0.000000e+00> : vector<1xf32>
    %86 = vector.multi_reduction <add>, %85, %cst_25 [1, 2] : vector<1x1x256xf32> to vector<1xf32>
    %87 = vector.shape_cast %86 : vector<1xf32> to vector<1x1x1xf32>
    %88 = vector.extract %87[0, 0, 0] : f32 from vector<1x1x1xf32>
    %89 = arith.addf %80, %88 : f32
    %90 = arith.addf %55, %72 : f32
    %91 = arith.addf %90, %89 : f32
    %c1_i32_26 = arith.constant 1 : i32
    %92 = tpu.dynamic_rotate %1 by %c1_i32_26 dim 1 : vector<12x256xf32>, i32 -> vector<12x256xf32>
    %93 = arith.subf %1, %92 : vector<12x256xf32>
    %94 = arith.mulf %93, %93 : vector<12x256xf32>
    %c0_i32_27 = arith.constant 0 : i32
    %95 = vector.broadcast %c0_i32_27 : i32 to vector<1x256xi32>
    %96 = arith.cmpi ne, %24, %95 : vector<1x256xi32>
    %cst_28 = arith.constant 0.000000e+00 : f32
    %97 = vector.shape_cast %96 : vector<1x256xi1> to vector<1x256xi1>
    %98 = vector.broadcast %97 : vector<1x256xi1> to vector<12x256xi1>
    %99 = vector.broadcast %cst_28 : f32 to vector<12x256xf32>
    %100 = arith.select %98, %94, %99 : vector<12x256xi1>, vector<12x256xf32>
    %101 = vector.shape_cast %100 : vector<12x256xf32> to vector<1x12x256xf32>
    %cst_29 = arith.constant dense<0.000000e+00> : vector<1xf32>
    %102 = vector.multi_reduction <add>, %101, %cst_29 [1, 2] : vector<1x12x256xf32> to vector<1xf32>
    %103 = vector.shape_cast %102 : vector<1xf32> to vector<1x1x1xf32>
    %104 = vector.extract %103[0, 0, 0] : f32 from vector<1x1x1xf32>
    %c16_i32_30 = arith.constant 16 : i32
    %105 = tpu.dynamic_rotate %1 by %c16_i32_30 dim 1 : vector<12x256xf32>, i32 -> vector<12x256xf32>
    %106 = arith.subf %1, %105 : vector<12x256xf32>
    %107 = arith.mulf %106, %106 : vector<12x256xf32>
    %c16_i32_31 = arith.constant 16 : i32
    %108 = vector.broadcast %c16_i32_31 : i32 to vector<1x256xi32>
    %109 = arith.cmpi sge, %8, %108 : vector<1x256xi32>
    %cst_32 = arith.constant 0.000000e+00 : f32
    %110 = vector.shape_cast %109 : vector<1x256xi1> to vector<1x256xi1>
    %111 = vector.broadcast %110 : vector<1x256xi1> to vector<12x256xi1>
    %112 = vector.broadcast %cst_32 : f32 to vector<12x256xf32>
    %113 = arith.select %111, %107, %112 : vector<12x256xi1>, vector<12x256xf32>
    %114 = vector.shape_cast %113 : vector<12x256xf32> to vector<1x12x256xf32>
    %cst_33 = arith.constant dense<0.000000e+00> : vector<1xf32>
    %115 = vector.multi_reduction <add>, %114, %cst_33 [1, 2] : vector<1x12x256xf32> to vector<1xf32>
    %116 = vector.shape_cast %115 : vector<1xf32> to vector<1x1x1xf32>
    %117 = vector.extract %116[0, 0, 0] : f32 from vector<1x1x1xf32>
    %c1_i32_34 = arith.constant 1 : i32
    %118 = tpu.dynamic_rotate %1 by %c1_i32_34 dim 0 : vector<12x256xf32>, i32 -> vector<12x256xf32>
    %119 = arith.subf %1, %118 : vector<12x256xf32>
    %120 = tpu.iota {dimensions = array<i32: 0>} : vector<12x1xi32>
    %c1_i32_35 = arith.constant 1 : i32
    %121 = vector.broadcast %c1_i32_35 : i32 to vector<12x1xi32>
    %122 = arith.cmpi sge, %120, %121 : vector<12x1xi32>
    %123 = arith.mulf %119, %119 : vector<12x256xf32>
    %cst_36 = arith.constant 0.000000e+00 : f32
    %124 = vector.shape_cast %122 : vector<12x1xi1> to vector<12x1xi1>
    %125 = vector.broadcast %124 : vector<12x1xi1> to vector<12x256xi1>
    %126 = vector.broadcast %cst_36 : f32 to vector<12x256xf32>
    %127 = arith.select %125, %123, %126 : vector<12x256xi1>, vector<12x256xf32>
    %128 = vector.shape_cast %127 : vector<12x256xf32> to vector<1x12x256xf32>
    %cst_37 = arith.constant dense<0.000000e+00> : vector<1xf32>
    %129 = vector.multi_reduction <add>, %128, %cst_37 [1, 2] : vector<1x12x256xf32> to vector<1xf32>
    %130 = vector.shape_cast %129 : vector<1xf32> to vector<1x1x1xf32>
    %131 = vector.extract %130[0, 0, 0] : f32 from vector<1x1x1xf32>
    %c0_i32_38 = arith.constant 0 : i32
    %132 = arith.cmpi eq, %arg1, %c0_i32_38 : i32
    %133 = arith.extui %132 : i1 to i32
    %c0_i32_39 = arith.constant 0 : i32
    %134 = arith.cmpi ne, %133, %c0_i32_39 : i32
    scf.if %134 {
      %174 = vector.extract_strided_slice %1 {offsets = [0, 0], sizes = [1, 256], strides = [1, 1]} : vector<12x256xf32> to vector<1x256xf32>
      %c0_52 = arith.constant 0 : index
      %c0_53 = arith.constant 0 : index
      %175 = vector.load %arg5[%c0_52, %c0_53] : memref<1x256xf32, #tpu.memory_space<vmem>>, vector<1x256xf32>
      tpu.vector_store %arg5[%c0_52, %c0_53], %174 {strides = array<i32>} : memref<1x256xf32, #tpu.memory_space<vmem>>, vector<1x256xf32>,
    } else {
    }
    %135 = vector.extract_strided_slice %1 {offsets = [0, 0], sizes = [1, 256], strides = [1, 1]} : vector<12x256xf32> to vector<1x256xf32>
    %c0_40 = arith.constant 0 : index
    %c0_41 = arith.constant 0 : index
    %136 = vector.load %arg5[%c0_40, %c0_41] : memref<1x256xf32, #tpu.memory_space<vmem>>, vector<1x256xf32>
    %137 = arith.subf %135, %136 : vector<1x256xf32>
    %138 = arith.mulf %137, %137 : vector<1x256xf32>
    %139 = vector.shape_cast %138 : vector<1x256xf32> to vector<1x1x256xf32>
    %cst_42 = arith.constant dense<0.000000e+00> : vector<1xf32>
    %140 = vector.multi_reduction <add>, %139, %cst_42 [1, 2] : vector<1x1x256xf32> to vector<1xf32>
    %141 = vector.shape_cast %140 : vector<1xf32> to vector<1x1x1xf32>
    %142 = vector.extract %141[0, 0, 0] : f32 from vector<1x1x1xf32>
    %143 = arith.addf %131, %142 : f32
    %144 = vector.extract_strided_slice %1 {offsets = [11, 0], sizes = [1, 256], strides = [1, 1]} : vector<12x256xf32> to vector<1x256xf32>
    %c0_43 = arith.constant 0 : index
    %c0_44 = arith.constant 0 : index
    %145 = vector.load %arg5[%c0_43, %c0_44] : memref<1x256xf32, #tpu.memory_space<vmem>>, vector<1x256xf32>
    tpu.vector_store %arg5[%c0_43, %c0_44], %144 {strides = array<i32>} : memref<1x256xf32, #tpu.memory_space<vmem>>, vector<1x256xf32>,
    %146 = tpu.iota {dimensions = array<i32: 0>} : vector<8x128xi32>
    %cst_45 = arith.constant 0.000000e+00 : f32
    %147 = vector.broadcast %cst_45 : f32 to vector<8x128xf32>
    %c0_i32_46 = arith.constant 0 : i32
    %148 = vector.broadcast %c0_i32_46 : i32 to vector<8x128xi32>
    %149 = arith.cmpi eq, %146, %148 : vector<8x128xi32>
    %150 = vector.broadcast %38 : f32 to vector<8x128xf32>
    %151 = arith.select %149, %150, %147 : vector<8x128xi1>, vector<8x128xf32>
    %c1_i32_47 = arith.constant 1 : i32
    %152 = vector.broadcast %c1_i32_47 : i32 to vector<8x128xi32>
    %153 = arith.cmpi eq, %146, %152 : vector<8x128xi32>
    %154 = vector.broadcast %91 : f32 to vector<8x128xf32>
    %155 = arith.select %153, %154, %151 : vector<8x128xi1>, vector<8x128xf32>
    %c2_i32 = arith.constant 2 : i32
    %156 = vector.broadcast %c2_i32 : i32 to vector<8x128xi32>
    %157 = arith.cmpi eq, %146, %156 : vector<8x128xi32>
    %158 = vector.broadcast %30 : f32 to vector<8x128xf32>
    %159 = arith.select %157, %158, %155 : vector<8x128xi1>, vector<8x128xf32>
    %c3_i32 = arith.constant 3 : i32
    %160 = vector.broadcast %c3_i32 : i32 to vector<8x128xi32>
    %161 = arith.cmpi eq, %146, %160 : vector<8x128xi32>
    %162 = vector.broadcast %143 : f32 to vector<8x128xf32>
    %163 = arith.select %161, %162, %159 : vector<8x128xi1>, vector<8x128xf32>
    %c4_i32 = arith.constant 4 : i32
    %164 = vector.broadcast %c4_i32 : i32 to vector<8x128xi32>
    %165 = arith.cmpi eq, %146, %164 : vector<8x128xi32>
    %166 = vector.broadcast %117 : f32 to vector<8x128xf32>
    %167 = arith.select %165, %166, %163 : vector<8x128xi1>, vector<8x128xf32>
    %c5_i32 = arith.constant 5 : i32
    %168 = vector.broadcast %c5_i32 : i32 to vector<8x128xi32>
    %169 = arith.cmpi eq, %146, %168 : vector<8x128xi32>
    %170 = vector.broadcast %104 : f32 to vector<8x128xf32>
    %171 = arith.select %169, %170, %167 : vector<8x128xi1>, vector<8x128xf32>
    %172 = vector.shape_cast %171 : vector<8x128xf32> to vector<1x1x8x128xf32>
    %c0_48 = arith.constant 0 : index
    %c0_49 = arith.constant 0 : index
    %c0_50 = arith.constant 0 : index
    %c0_51 = arith.constant 0 : index
    %173 = vector.load %arg4[%c0_48, %c0_49, %c0_50, %c0_51] : memref<1x1x8x128xf32, #tpu.memory_space<vmem>>, vector<1x1x8x128xf32>
    tpu.vector_store %arg4[%c0_48, %c0_49, %c0_50, %c0_51], %172 {strides = array<i32>} : memref<1x1x8x128xf32, #tpu.memory_space<vmem>>, vector<1x1x8x128xf32>,
    return
  }
  func.func @transform_0(%arg0: i32, %arg1: i32) -> (i32, i32, i32) {
    %c0_i32 = arith.constant 0 : i32
    %c0_i32_0 = arith.constant 0 : i32
    return %arg0, %arg1, %c0_i32 : i32, i32, i32
  }
  func.func @transform_1(%arg0: i32, %arg1: i32) -> (i32, i32, i32) {
    %c0_i32 = arith.constant 0 : i32
    %c0_i32_0 = arith.constant 0 : i32
    return %arg0, %arg1, %c0_i32 : i32, i32, i32
  }
  func.func @transform_2(%arg0: i32, %arg1: i32) -> (i32, i32, i32, i32) {
    %c0_i32 = arith.constant 0 : i32
    %c0_i32_0 = arith.constant 0 : i32
    %c0_i32_1 = arith.constant 0 : i32
    return %arg0, %arg1, %c0_i32, %c0_i32_0 : i32, i32, i32, i32
  }
}

module attributes {stable_mosaic.version = 11 : i64} {
  func.func @_recon_partials_kernel(%arg0: i32, %arg1: memref<24x256xf32, #tpu.memory_space<vmem>>, %arg2: memref<24x256xf32, #tpu.memory_space<vmem>>, %arg3: memref<1x8x128xf32, #tpu.memory_space<vmem>>) attributes {dimension_semantics = [#tpu.dimension_semantics<parallel>], iteration_bounds = array<i64: 1>, scalar_prefetch = 0 : i64, scratch_operands = 0 : i64, tpu.core_type = #tpu.core_type<tc>, window_params = [{transform_indices = @transform_0, window_bounds = array<i64: 24, 256>}, {transform_indices = @transform_1, window_bounds = array<i64: 24, 256>}, {transform_indices = @transform_2, window_bounds = array<i64: 1, 8, 128>}]} {
    %c0 = arith.constant 0 : index
    %c0_0 = arith.constant 0 : index
    %0 = vector.load %arg1[%c0, %c0_0] : memref<24x256xf32, #tpu.memory_space<vmem>>, vector<24x256xf32>
    %c0_1 = arith.constant 0 : index
    %c0_2 = arith.constant 0 : index
    %1 = vector.load %arg2[%c0_1, %c0_2] : memref<24x256xf32, #tpu.memory_space<vmem>>, vector<24x256xf32>
    %2 = arith.subf %0, %1 : vector<24x256xf32>
    %3 = arith.mulf %2, %2 : vector<24x256xf32>
    %4 = vector.shape_cast %3 : vector<24x256xf32> to vector<1x24x256xf32>
    %cst = arith.constant dense<0.000000e+00> : vector<1xf32>
    %5 = vector.multi_reduction <add>, %4, %cst [1, 2] : vector<1x24x256xf32> to vector<1xf32>
    %6 = vector.shape_cast %5 : vector<1xf32> to vector<1x1x1xf32>
    %7 = vector.extract %6[0, 0, 0] : f32 from vector<1x1x1xf32>
    %8 = vector.broadcast %7 : f32 to vector<1x8x128xf32>
    %c0_3 = arith.constant 0 : index
    %c0_4 = arith.constant 0 : index
    %c0_5 = arith.constant 0 : index
    %9 = vector.load %arg3[%c0_3, %c0_4, %c0_5] : memref<1x8x128xf32, #tpu.memory_space<vmem>>, vector<1x8x128xf32>
    tpu.vector_store %arg3[%c0_3, %c0_4, %c0_5], %8 {strides = array<i32>} : memref<1x8x128xf32, #tpu.memory_space<vmem>>, vector<1x8x128xf32>,
    return
  }
  func.func @transform_0(%arg0: i32) -> (i32, i32) {
    %c0_i32 = arith.constant 0 : i32
    %c0_i32_0 = arith.constant 0 : i32
    return %arg0, %c0_i32 : i32, i32
  }
  func.func @transform_1(%arg0: i32) -> (i32, i32) {
    %c0_i32 = arith.constant 0 : i32
    %c0_i32_0 = arith.constant 0 : i32
    return %arg0, %c0_i32 : i32, i32
  }
  func.func @transform_2(%arg0: i32) -> (i32, i32, i32) {
    %c0_i32 = arith.constant 0 : i32
    %c0_i32_0 = arith.constant 0 : i32
    %c0_i32_1 = arith.constant 0 : i32
    return %arg0, %c0_i32, %c0_i32_0 : i32, i32, i32
  }
}

</mosaic_0001>

<llo_original>
// kernel: miccai2018_loss.4
$region0: #{miccai2018_loss.4}
  #allocation0 [shape = 'u32[]', space=smem, size = 0x4, offset = 0x4, fixed_abs, tag = 'smem constant byte address 0x4 - core index']
  #allocation1 [shape = 'u32[72,128]{1,0:T(1,128)}', space=vmem, size = 0x9000, scoped, tag = 'internal scratch']
  #allocation2 [shape = 'f32[1,256]{1,0:T(1,128)}', space=vmem, size = 0x400, scoped, tag = 'scratch operand']
  %s0 = inlined_call_operand.vmem [shape: f32[6,12,256], index: 0, kind: input, shape index: {}]
  %s1 = inlined_call_operand.vmem [shape: f32[6,12,256], index: 1, kind: input, shape index: {}]
  %s2 = inlined_call_operand.vmem [shape: f32[6,1,8,128], index: 2, kind: output, shape index: {}]
  %s3 = sld [smem:[#allocation0]]
  $region45: #{miccai2018_loss.4} parent=0
    _
  %s5 = ssub.s32 1, %s3
  %s6 = scalar_select 0, %s5, %s3
  loop: start=0, step=1, limit=8
  $region2: #{miccai2018_loss.4} parent=0 // loop_pre_header
    _
  $region3: #{miccai2018_loss.4} parent=0 // loop_header
    %s8 = sphi 0, %s12
    %p9 = scmp.ge.s32.totalorder %s8, 8
    %s15 = sphi 0, %s27
    %s16 = sphi 0, %s23
    %s17 = sphi 0, %s15
    %s18 = sphi 0, %s16
    %s19 = sphi 0, %s17
    %s20 = sphi 0, %s18
    %s32 = sphi 0, %s34
    %s35 = sphi 0, %s32
    %s36 = sphi 0, %s35
    %s52 = sphi 0, %s36
    %s60 = sphi 0, %s62
    %s63 = sphi 0, %s60
    %s64 = sphi 0, %s63
    %s80 = sphi 0, %s64
    %s88 = sphi 0, %s90
    %s91 = sphi 0, %s88
    %s92 = sphi 0, %s91
    %s108 = sphi 0, %s92
  $region4: #{miccai2018_loss.4} parent=0 // loop_header_branch
    %11 = sbr.rel (%p9) target = $region8
  $region5: #{miccai2018_loss.4} parent=0 // loop_body
    %s13 = ssub.s32 %s8, 1
    %s14 = ssub.s32 %s8, 2
    %s21 = sadd.s32 1, %s16
    %p22 = scmp.ge.s32.totalorder %s21, 1
    %s23 = scalar_select %p22, 0, %s21
    %s24 = sadd.s32 1, %s15
    %s25 = scalar_select %p22, %s24, %s15
    %p26 = scmp.ge.s32.totalorder %s25, 6
    %s27 = scalar_select %p26, 0, %s25
    %s28 = ssub.s32 %s15, %s27
    %s29 = ssub.s32 %s16, %s23
    %s30 = sor.u32 %s28, %s29
    %p31 = scmp.eq.s32.totalorder %s30, 0
    %s33 = sadd.s32 %s32, 1
    %s34 = scalar_select %p31, %s32, %s33
    %p37 = pneg %p31
    %p38 = scmp.eq.s32.totalorder %s8, 5
    %p39 = por %p37, %p38
    %p40 = scmp.ne.s32.totalorder %s32, %s35
    %p41 = scmp.eq.s32.totalorder %s8, 0
    %p42 = por %p40, %p41
    %p43 = scmp.ne.s32.totalorder %s32, %s35
    %p44 = scmp.eq.s32.totalorder %s13, 5
    %p45 = por %p43, %p44
    %p46 = scmp.ne.s32.totalorder %s35, %s36
    %p47 = scmp.eq.s32.totalorder %s13, 0
    %p48 = por %p46, %p47
    %p49 = scmp.ne.s32.totalorder %s35, %s36
    %p50 = scmp.eq.s32.totalorder %s14, 5
    %p51 = por %p49, %p50
    %p53 = scmp.ne.s32.totalorder %s36, %s52
    %p54 = scmp.eq.s32.totalorder %s14, 0
    %p55 = por %p53, %p54
    %s56 = ssub.s32 %s15, %s27
    %s57 = ssub.s32 %s16, %s23
    %s58 = sor.u32 %s56, %s57
    %p59 = scmp.eq.s32.totalorder %s58, 0
    %s61 = sadd.s32 %s60, 1
    %s62 = scalar_select %p59, %s60, %s61
    %p65 = pneg %p59
    %p66 = scmp.eq.s32.totalorder %s8, 5
    %p67 = por %p65, %p66
    %p68 = scmp.ne.s32.totalorder %s60, %s63
    %p69 = scmp.eq.s32.totalorder %s8, 0
    %p70 = por %p68, %p69
    %p71 = scmp.ne.s32.totalorder %s60, %s63
    %p72 = scmp.eq.s32.totalorder %s13, 5
    %p73 = por %p71, %p72
    %p74 = scmp.ne.s32.totalorder %s63, %s64
    %p75 = scmp.eq.s32.totalorder %s13, 0
    %p76 = por %p74, %p75
    %p77 = scmp.ne.s32.totalorder %s63, %s64
    %p78 = scmp.eq.s32.totalorder %s14, 5
    %p79 = por %p77, %p78
    %p81 = scmp.ne.s32.totalorder %s64, %s80
    %p82 = scmp.eq.s32.totalorder %s14, 0
    %p83 = por %p81, %p82
    %s84 = ssub.s32 %s15, %s27
    %s85 = ssub.s32 %s16, %s23
    %s86 = sor.u32 %s84, %s85
    %p87 = scmp.eq.s32.totalorder %s86, 0
    %s89 = sadd.s32 %s88, 1
    %s90 = scalar_select %p87, %s88, %s89
    %p93 = pneg %p87
    %p94 = scmp.eq.s32.totalorder %s8, 5
    %p95 = por %p93, %p94
    %p96 = scmp.ne.s32.totalorder %s88, %s91
    %p97 = scmp.eq.s32.totalorder %s8, 0
    %p98 = por %p96, %p97
    %p99 = scmp.ne.s32.totalorder %s88, %s91
    %p100 = scmp.eq.s32.totalorder %s13, 5
    %p101 = por %p99, %p100
    %p102 = scmp.ne.s32.totalorder %s91, %s92
    %p103 = scmp.eq.s32.totalorder %s13, 0
    %p104 = por %p102, %p103
    %p105 = scmp.ne.s32.totalorder %s91, %s92
    %p106 = scmp.eq.s32.totalorder %s14, 5
    %p107 = por %p105, %p106
    %p109 = scmp.ne.s32.totalorder %s92, %s108
    %p110 = scmp.eq.s32.totalorder %s14, 0
    %p111 = por %p109, %p110
    %p112 = scmp.le.s32.totalorder 1, %s8
    %p113 = scmp.lt.s32.totalorder %s8, 7
    %p114 = pnand %p112, %p113
    %p115 = pneg %p114
    // Predicated region
    $region9: #{miccai2018_loss.4} parent=5 // pred_check
      _
    $region10: #{miccai2018_loss.4} parent=5 // pred_check_branch
      %117 = sbr.rel (%p114) target = $region12
    $region11: #{miccai2018_loss.4} parent=5 // pred_region
      %s118 = ssub.s32 %s8, 1
    $region12: #{miccai2018_loss.4} parent=5 // pred_fallthru
      _
    %p119 = scmp.lt.s32.totalorder %s8, 6
    // Predicated region
    $region13: #{miccai2018_loss.4} parent=5 // pred_check
      %p120 = pneg %p119
    $region14: #{miccai2018_loss.4} parent=5 // pred_check_branch
      %122 = sbr.rel (%p120) target = $region16
    $region15: #{miccai2018_loss.4} parent=5 // pred_region
      // Predicated region
      $region17: #{miccai2018_loss.4} parent=15 // pred_check
        %p123 = pneg %p42
      $region18: #{miccai2018_loss.4} parent=15 // pred_check_branch
        %125 = sbr.rel (%p123) target = $region20
      $region19: #{miccai2018_loss.4} parent=15 // pred_region
        %s126 = smul.u32 2, %s16
        %p127 = scmp.lt.s32.totalorder %s15, 5
        %s128 = scalar_select %p127, %s15, 5
        %p129 = scmp.lt.s32.totalorder %s126, 1
        %s130 = scalar_select %p129, %s126, 1
        %s131 = smul.addr %s130, 2
        %s132 = smul.addr %s128, 4
        %s133 = sadd.s32 %s131, %s132
        %s134 = smul.addr %s133, 8
        %s135 = scalar_lea.vmem %s0, %s134
        %s136 = smul.u32 2, %s16
      $region20: #{miccai2018_loss.4} parent=15 // pred_fallthru
        _
      // Predicated region
      $region21: #{miccai2018_loss.4} parent=15 // pred_check
        %p137 = pneg %p70
      $region22: #{miccai2018_loss.4} parent=15 // pred_check_branch
        %139 = sbr.rel (%p137) target = $region24
      $region23: #{miccai2018_loss.4} parent=15 // pred_region
        %s140 = smul.u32 2, %s16
        %p141 = scmp.lt.s32.totalorder %s15, 5
        %s142 = scalar_select %p141, %s15, 5
        %p143 = scmp.lt.s32.totalorder %s140, 1
        %s144 = scalar_select %p143, %s140, 1
        %s145 = smul.addr %s144, 2
        %s146 = smul.addr %s142, 4
        %s147 = sadd.s32 %s145, %s146
        %s148 = smul.addr %s147, 8
        %s149 = scalar_lea.vmem %s1, %s148
        %s150 = smul.u32 2, %s16
      $region24: #{miccai2018_loss.4} parent=15 // pred_fallthru
        _
    $region16: #{miccai2018_loss.4} parent=5 // pred_fallthru
      _
    %p151 = scmp.le.s32.totalorder 1, %s8
    %p152 = scmp.lt.s32.totalorder %s8, 7
    %p153 = pnand %p151, %p152
    %p154 = pneg %p153
    // Predicated region
    $region25: #{miccai2018_loss.4} parent=5 // pred_check
      _
    $region26: #{miccai2018_loss.4} parent=5 // pred_check_branch
      %156 = sbr.rel (%p153) target = $region28
    $region27: #{miccai2018_loss.4} parent=5 // pred_region
      %s157 = ssub.s32 %s8, 1
      %s158 = smul.u32 2, %s18
      %p159 = scmp.lt.s32.totalorder %s17, 5
      %s160 = scalar_select %p159, %s17, 5
      %p161 = scmp.lt.s32.totalorder %s158, 1
      %s162 = scalar_select %p161, %s158, 1
      %s163 = smul.addr %s162, 2
      %s164 = smul.addr %s160, 4
      %s165 = sadd.s32 %s163, %s164
      %s166 = smul.addr %s165, 8
      %s167 = scalar_lea.vmem %s0, %s166
      %p168 = pneg %p48
      %p169 = pneg %p45
      %s170 = smul.u32 2, %s18
      %p171 = scmp.lt.s32.totalorder %s17, 5
      %s172 = scalar_select %p171, %s17, 5
      %p173 = scmp.lt.s32.totalorder %s170, 1
      %s174 = scalar_select %p173, %s170, 1
      %s175 = smul.addr %s174, 2
      %s176 = smul.addr %s172, 4
      %s177 = sadd.s32 %s175, %s176
      %s178 = smul.addr %s177, 8
      %s179 = scalar_lea.vmem %s1, %s178
      %p180 = pneg %p76
      %p181 = pneg %p73
      %p182 = pneg %p104
      %p183 = pneg %p101
      %p184 = scmp.lt.s32.totalorder %s17, 5
      %s185 = scalar_select %p184, %s17, 5
      %p186 = scmp.lt.s32.totalorder %s18, 0
      %s187 = scalar_select %p186, %s18, 0
      %s188 = sadd.s32 %s187, %s185
      %s189 = smul.addr %s188, 8
      %s190 = scalar_lea.vmem %s2, %s189
      %s191 = smul.u32 2, %s18
      %p192 = scmp.lt.s32.totalorder %s17, 5
      %s193 = scalar_select %p192, %s17, 5
      %p194 = scmp.lt.s32.totalorder %s191, 1
      %s195 = scalar_select %p194, %s191, 1
      %s196 = smul.addr %s195, 2
      %s197 = smul.addr %s193, 4
      %s198 = sadd.s32 %s196, %s197
      %s199 = smul.addr %s198, 8
      %s200 = scalar_lea.vmem %s0, %s199
      %s201 = smul.u32 2, %s18
      %s202 = smul.u32 2, %s18
      %p203 = scmp.lt.s32.totalorder %s17, 5
      %s204 = scalar_select %p203, %s17, 5
      %p205 = scmp.lt.s32.totalorder %s202, 1
      %s206 = scalar_select %p205, %s202, 1
      %s207 = smul.addr %s206, 2
      %s208 = smul.addr %s204, 4
      %s209 = sadd.s32 %s207, %s208
      %s210 = smul.addr %s209, 8
      %s211 = scalar_lea.vmem %s1, %s210
      %s212 = smul.u32 2, %s18
      %p213 = scmp.lt.s32.totalorder %s17, 5
      %s214 = scalar_select %p213, %s17, 5
      %p215 = scmp.lt.s32.totalorder %s18, 0
      %s216 = scalar_select %p215, %s18, 0
      %s217 = sadd.s32 %s216, %s214
      %s218 = smul.addr %s217, 8
      %s219 = scalar_lea.vmem %s2, %s218
      %v220 = vld [vmem:[%s200] sm:$0xff]
      %v221 = vld [vmem:[%s200 + $0x8] sm:$0xff]
      %v222 = vld [vmem:[%s200 + $0x10] sm:$0xf]
      %v223 = vld [vmem:[%s200 + $0x18] sm:$0xf]
      %v224 = vld [vmem:[%s211] sm:$0xff]
      %v225 = vld [vmem:[%s211 + $0x8] sm:$0xff]
      %v226 = vld [vmem:[%s211 + $0x10] sm:$0xf]
      %v227 = vld [vmem:[%s211 + $0x18] sm:$0xf]
      %v228 = vlaneseq
      %v229 = vshrl.u32 %v228, 7
      %v230 = vadd.s32 %v229, 8
      %s231 = smul.u32 %s18, 12
      %v232 = vstv %s231
      %v233 = vadd.s32 %v229, %v232
      %v234 = vadd.s32 %v230, %v232
      %v235 = vlaneseq
      %v236 = vand.u32 %v235, 127
      %v237 = vadd.s32 %v236, 128
      %vm238 = vcmp.lt.s32.totalorder %v236, 0
      %v239 = vsub.s32 0, %v236
      %v240 = vsel %vm238, %v239, %v236
      %v241 = vshrl.u32 %v240, 4
      %v242 = vand.u32 %v240, 15
      %v243 = vsub.s32 0, %v242
      %v244 = vsel %vm238, %v243, %v242
      %vm245 = vcmp.lt.s32.totalorder %v237, 0
      %v246 = vsub.s32 0, %v237
      %v247 = vsel %vm245, %v246, %v237
      %v248 = vshrl.u32 %v247, 4
      %v249 = vand.u32 %v247, 15
      %v250 = vsub.s32 0, %v249
      %v251 = vsel %vm245, %v250, %v249
      %vm252 = vcmp.ne.s32.totalorder %v244, 0
      %vm253 = vcmp.ne.s32.totalorder %v251, 0
      %vm254 = vcmp.lt.s32.totalorder %v244, 0
      %vm255 = vcmp.lt.s32.totalorder %v251, 0
      %vm256 = vmand %vm254, %vm252
      %vm257 = vmand %vm255, %vm253
      %v258 = vadd.s32 %v244, 16
      %v259 = vadd.s32 %v251, 16
      %v260 = vsel %vm256, %v258, %v244
      %v261 = vsel %vm257, %v259, %v251
      %v262 = vmul.f32 %v224, %v224
      %v263 = vmul.f32 %v225, %v225
      %v264 = vmul.f32 %v226, %v226
      %v265 = vmul.f32 %v227, %v227
      %v266 = vlog2.pop %v262
      %v267 = vmul.f32 %v266, 0.6931472
      %v268 = vlog2.pop %v263
      %v269 = vmul.f32 %v268, 0.6931472
      %v270 = vlog2.pop %v264
      %v271 = vmul.f32 %v270, 0.6931472
      %v272 = vlog2.pop %v265
      %v273 = vmul.f32 %v272, 0.6931472
      %v274 = vadd.f32 %v267, %v269
      %vm275 = vcmask 1043456
      %v276 = vsel %vm275, %v271, 0.0
      %v277 = vadd.f32 %v274, %v276
      %v278 = vsel %vm275, %v273, 0.0
      %v279 = vadd.f32 %v277, %v278
      %280 = vadd.xlane.f32.xlu0 %v279
      %v281 = vpop.xlane.xlu0 %280
      %v282 = vrot.slane %v281, 4
      %v283 = vadd.f32 %v281, %v282
      %v284 = vrot.slane %v283, 2
      %v285 = vadd.f32 %v283, %v284
      %v286 = vrot.slane %v285, 1
      %v287 = vadd.f32 %v285, %v286
      %s288 = vtos %v287
      %v289 = vadd.f32 %v262, %v263
      %290 = vadd.xlane.f32.xlu0 %v289
      %v291 = vpop.xlane.xlu0 %290
      %v292 = vsel %vm275, %v264, 0.0
      %v293 = vsel %vm275, %v265, 0.0
      %v294 = vadd.f32 %v292, %v293
      %295 = vadd.xlane.f32.xlu0 %v294
      %v296 = vpop.xlane.xlu0 %295
      %v297 = vadd.f32 %v262, %v292
      %v298 = vrot.slane %v297, 4
      %v299 = vadd.f32 %v297, %v298
      %v300 = vrot.slane %v299, 2
      %v301 = vadd.f32 %v299, %v300
      %v302 = vrot.slane %v301, 1
      %v303 = vadd.f32 %v301, %v302
      %v304 = vadd.f32 %v263, %v293
      %v305 = vrot.slane %v304, 4
      %v306 = vadd.f32 %v304, %v305
      %v307 = vrot.slane %v306, 2
      %v308 = vadd.f32 %v306, %v307
      %v309 = vrot.slane %v308, 1
      %v310 = vadd.f32 %v308, %v309
      %vm311 = vcmask 7168
      %v312 = vsel %vm311, %v291, 0.0
      %vm313 = vcmask 3072
      %v314 = vsel %vm313, %v296, 0.0
      %v315 = vadd.f32 %v312, %v314
      %316 = vadd.xlane.f32.xlu0 %v315
      %v317 = vpop.xlane.xlu0 %316
      %v318 = vrot.slane %v317, 4
      %v319 = vadd.f32 %v317, %v318
      %v320 = vrot.slane %v319, 2
      %v321 = vadd.f32 %v319, %v320
      %v322 = vrot.slane %v321, 1
      %v323 = vadd.f32 %v321, %v322
      %s324 = vtos %v323
      %vm325 = vcmp.eq.s32.totalorder %v233, 0
      %vm326 = vcmp.eq.s32.totalorder %v234, 0
      %v327 = vsel %vm325, %v291, 0.0
      %v328 = vsel %vm326, %v296, 0.0
      %v329 = vsel %vm311, %v327, 0.0
      %v330 = vsel %vm313, %v328, 0.0
      %v331 = vadd.f32 %v329, %v330
      %332 = vadd.xlane.f32.xlu0 %v331
      %v333 = vpop.xlane.xlu0 %332
      %v334 = vrot.slane %v333, 4
      %v335 = vadd.f32 %v333, %v334
      %v336 = vrot.slane %v335, 2
      %v337 = vadd.f32 %v335, %v336
      %v338 = vrot.slane %v337, 1
      %v339 = vadd.f32 %v337, %v338
      %s340 = vtos %v339
      %vm341 = vcmp.eq.s32.totalorder %v233, 11
      %vm342 = vcmp.eq.s32.totalorder %v234, 11
      %v343 = vsel %vm341, %v291, 0.0
      %v344 = vsel %vm342, %v296, 0.0
      %v345 = vsel %vm311, %v343, 0.0
      %v346 = vsel %vm313, %v344, 0.0
      %v347 = vadd.f32 %v345, %v346
      %348 = vadd.xlane.f32.xlu0 %v347
      %v349 = vpop.xlane.xlu0 %348
      %v350 = vrot.slane %v349, 4
      %v351 = vadd.f32 %v349, %v350
      %v352 = vrot.slane %v351, 2
      %v353 = vadd.f32 %v351, %v352
      %v354 = vrot.slane %v353, 1
      %v355 = vadd.f32 %v353, %v354
      %s356 = vtos %v355
      %s357 = sadd.f32 %s340, %s356
      %vm358 = vcmp.lt.s32.totalorder %v236, 16
      %vm359 = vcmp.lt.s32.totalorder %v237, 16
      %v360 = vsel %vm358, %v303, 0.0
      %v361 = vsel %vm359, %v310, 0.0
      %vm362 = vcmask 1040384
      %v363 = vsel %vm362, %v360, 0.0
      %v364 = vsel %vm362, %v361, 0.0
      %v365 = vadd.f32 %v363, %v364
      %366 = vadd.xlane.f32.xlu0 %v365
      %v367 = vpop.xlane.xlu0 %366
      %v368 = vrot.slane %v367, 4
      %v369 = vadd.f32 %v367, %v368
      %v370 = vrot.slane %v369, 2
      %v371 = vadd.f32 %v369, %v370
      %v372 = vrot.slane %v371, 1
      %v373 = vadd.f32 %v371, %v372
      %s374 = vtos %v373
      %vm375 = vcmp.ge.s32.totalorder %v236, 240
      %vm376 = vcmp.ge.s32.totalorder %v237, 240
      %v377 = vsel %vm375, %v303, 0.0
      %v378 = vsel %vm376, %v310, 0.0
      %v379 = vsel %vm362, %v377, 0.0
      %v380 = vsel %vm362, %v378, 0.0
      %v381 = vadd.f32 %v379, %v380
      %382 = vadd.xlane.f32.xlu0 %v381
      %v383 = vpop.xlane.xlu0 %382
      %v384 = vrot.slane %v383, 4
      %v385 = vadd.f32 %v383, %v384
      %v386 = vrot.slane %v385, 2
      %v387 = vadd.f32 %v385, %v386
      %v388 = vrot.slane %v387, 1
      %v389 = vadd.f32 %v387, %v388
      %s390 = vtos %v389
      %s391 = sadd.f32 %s374, %s390
      %vm392 = vcmp.eq.s32.totalorder %v260, 0
      %vm393 = vcmp.eq.s32.totalorder %v261, 0
      %v394 = vsel %vm392, %v303, 0.0
      %v395 = vsel %vm393, %v310, 0.0
      %v396 = vsel %vm362, %v394, 0.0
      %v397 = vsel %vm362, %v395, 0.0
      %v398 = vadd.f32 %v396, %v397
      %399 = vadd.xlane.f32.xlu0 %v398
      %v400 = vpop.xlane.xlu0 %399
      %v401 = vrot.slane %v400, 4
      %v402 = vadd.f32 %v400, %v401
      %v403 = vrot.slane %v402, 2
      %v404 = vadd.f32 %v402, %v403
      %v405 = vrot.slane %v404, 1
      %v406 = vadd.f32 %v404, %v405
      %s407 = vtos %v406
      %vm408 = vcmp.eq.s32.totalorder %v260, 15
      %vm409 = vcmp.eq.s32.totalorder %v261, 15
      %v410 = vsel %vm408, %v303, 0.0
      %v411 = vsel %vm409, %v310, 0.0
      %v412 = vsel %vm362, %v410, 0.0
      %v413 = vsel %vm362, %v411, 0.0
      %v414 = vadd.f32 %v412, %v413
      %415 = vadd.xlane.f32.xlu0 %v414
      %v416 = vpop.xlane.xlu0 %415
      %v417 = vrot.slane %v416, 4
      %v418 = vadd.f32 %v416, %v417
      %v419 = vrot.slane %v418, 2
      %v420 = vadd.f32 %v418, %v419
      %v421 = vrot.slane %v420, 1
      %v422 = vadd.f32 %v420, %v421
      %s423 = vtos %v422
      %s424 = sadd.f32 %s407, %s423
      %s425 = sadd.f32 %s357, %s391
      %s426 = sadd.f32 %s425, %s424
      %427 = vrot.lane.b32.xlu0 %v220, 1
      %v428 = vpop.permute.xlu0 %427
      %429 = vrot.lane.b32.xlu0 %v222, 1
      %v430 = vpop.permute.xlu0 %429
      %431 = vrot.lane.b32.xlu0 %v221, 1
      %v432 = vpop.permute.xlu0 %431
      %433 = vrot.lane.b32.xlu0 %v223, 1
      %v434 = vpop.permute.xlu0 %433
      %vm435 = vcmp.lt.s32.totalorder %v236, 1
      %v436 = vsel %vm435, %v428, %v432
      %v437 = vsel %vm435, %v430, %v434
      %v438 = vsel %vm435, %v432, %v428
      %v439 = vsel %vm435, %v434, %v430
      %v440 = vsub.f32 %v220, %v438
      %v441 = vsub.f32 %v221, %v436
      %v442 = vsub.f32 %v222, %v439
      %v443 = vsub.f32 %v223, %v437
      %v444 = vmul.f32 %v440, %v440
      %v445 = vmul.f32 %v441, %v441
      %v446 = vmul.f32 %v442, %v442
      %v447 = vmul.f32 %v443, %v443
      %vm448 = vcmp.ne.s32.totalorder %v260, 0
      %vm449 = vcmp.ne.s32.totalorder %v261, 0
      %v450 = vsel %vm448, 1, 0
      %v451 = vsel %vm449, 1, 0
      %vm452 = vcmp.eq.s32.totalorder %v450, 1
      %vm453 = vcmp.eq.s32.totalorder %v451, 1
      %v454 = vsel %vm452, %v444, 0.0
      %v455 = vsel %vm453, %v445, 0.0
      %v456 = vsel %vm452, %v446, 0.0
      %v457 = vsel %vm453, %v447, 0.0
      %v458 = vadd.f32 %v454, %v455
      %v459 = vsel %vm275, %v456, 0.0
      %v460 = vadd.f32 %v458, %v459
      %v461 = vsel %vm275, %v457, 0.0
      %v462 = vadd.f32 %v460, %v461
      %463 = vadd.xlane.f32.xlu0 %v462
      %v464 = vpop.xlane.xlu0 %463
      %v465 = vrot.slane %v464, 4
      %v466 = vadd.f32 %v464, %v465
      %v467 = vrot.slane %v466, 2
      %v468 = vadd.f32 %v466, %v467
      %v469 = vrot.slane %v468, 1
      %v470 = vadd.f32 %v468, %v469
      %s471 = vtos %v470
      %472 = vrot.lane.b32.xlu0 %v220, 16
      %v473 = vpop.permute.xlu0 %472
      %474 = vrot.lane.b32.xlu0 %v222, 16
      %v475 = vpop.permute.xlu0 %474
      %476 = vrot.lane.b32.xlu0 %v221, 16
      %v477 = vpop.permute.xlu0 %476
      %478 = vrot.lane.b32.xlu0 %v223, 16
      %v479 = vpop.permute.xlu0 %478
      %v480 = vsel %vm358, %v473, %v477
      %v481 = vsel %vm358, %v475, %v479
      %v482 = vsel %vm358, %v477, %v473
      %v483 = vsel %vm358, %v479, %v475
      %v484 = vsub.f32 %v220, %v482
      %v485 = vsub.f32 %v221, %v480
      %v486 = vsub.f32 %v222, %v483
      %v487 = vsub.f32 %v223, %v481
      %v488 = vmul.f32 %v484, %v484
      %v489 = vmul.f32 %v485, %v485
      %v490 = vmul.f32 %v486, %v486
      %v491 = vmul.f32 %v487, %v487
      %vm492 = vcmp.ge.s32.totalorder %v236, 16
      %vm493 = vcmp.ge.s32.totalorder %v237, 16
      %v494 = vsel %vm492, 1, 0
      %v495 = vsel %vm493, 1, 0
      %vm496 = vcmp.eq.s32.totalorder %v494, 1
      %vm497 = vcmp.eq.s32.totalorder %v495, 1
      %v498 = vsel %vm496, %v488, 0.0
      %v499 = vsel %vm497, %v489, 0.0
      %v500 = vsel %vm496, %v490, 0.0
      %v501 = vsel %vm497, %v491, 0.0
      %v502 = vadd.f32 %v498, %v499
      %v503 = vsel %vm275, %v500, 0.0
      %v504 = vadd.f32 %v502, %v503
      %v505 = vsel %vm275, %v501, 0.0
      %v506 = vadd.f32 %v504, %v505
      %507 = vadd.xlane.f32.xlu0 %v506
      %v508 = vpop.xlane.xlu0 %507
      %v509 = vrot.slane %v508, 4
      %v510 = vadd.f32 %v508, %v509
      %v511 = vrot.slane %v510, 2
      %v512 = vadd.f32 %v510, %v511
      %v513 = vrot.slane %v512, 1
      %v514 = vadd.f32 %v512, %v513
      %s515 = vtos %v514
      %vm516 = vcmask 1047556
      %v517 = vrot.slane %v220, 4
      %v518 = vsel %vm516, %v517, %v222
      %v519 = vrot.slane %v221, 4
      %v520 = vsel %vm516, %v519, %v223
      %v521 = vrot.slane %v518, 4
      %v522 = vrot.slane %v520, 4
      %v523 = vsel %vm516, %v521, %v517
      %v524 = vsel %vm516, %v522, %v519
      %vm529 = vcmask 1044480
      %v530 = vrot.slane %v518, 3
      %v531 = vrot.slane %v523, 3
      %v532 = vsel %vm529, %v530, %v531
      %v533 = vrot.slane %v520, 3
      %v534 = vrot.slane %v524, 3
      %v535 = vsel %vm529, %v533, %v534
      %v540 = vsub.f32 %v220, %v532
      %v541 = vsub.f32 %v221, %v535
      %v542 = vsub.f32 %v222, %v531
      %v543 = vsub.f32 %v223, %v534
      %vm544 = vcmp.ge.s32.totalorder %v229, 1
      %vm545 = vcmp.ge.s32.totalorder %v230, 1
      %v546 = vmul.f32 %v540, %v540
      %v547 = vmul.f32 %v541, %v541
      %v548 = vmul.f32 %v542, %v542
      %v549 = vmul.f32 %v543, %v543
      %v550 = vsel %vm544, 1, 0
      %v551 = vsel %vm545, 1, 0
      %vm552 = vcmp.eq.s32.totalorder %v550, 1
      %vm553 = vcmp.eq.s32.totalorder %v551, 1
      %v554 = vsel %vm552, %v546, 0.0
      %v555 = vsel %vm552, %v547, 0.0
      %v556 = vsel %vm553, %v548, 0.0
      %v557 = vsel %vm553, %v549, 0.0
      %v558 = vadd.f32 %v554, %v555
      %v559 = vsel %vm275, %v556, 0.0
      %v560 = vadd.f32 %v558, %v559
      %v561 = vsel %vm275, %v557, 0.0
      %v562 = vadd.f32 %v560, %v561
      %563 = vadd.xlane.f32.xlu0 %v562
      %v564 = vpop.xlane.xlu0 %563
      %v565 = vrot.slane %v564, 4
      %v566 = vadd.f32 %v564, %v565
      %v567 = vrot.slane %v566, 2
      %v568 = vadd.f32 %v566, %v567
      %v569 = vrot.slane %v568, 1
      %v570 = vadd.f32 %v568, %v569
      %s571 = vtos %v570
      %p572 = scmp.eq.s32.totalorder %s18, 0
      // Predicated region
      $region29: #{miccai2018_loss.4} parent=27 // pred_check
        %p573 = pneg %p572
      $region30: #{miccai2018_loss.4} parent=27 // pred_check_branch
        %575 = sbr.rel (%p573) target = $region32
      $region31: #{miccai2018_loss.4} parent=27 // pred_region
        %v578 = vrot.slane %v221, 7
        %v579 = vsel %vm362, %v220, %v578
        %v581 = vlaneseq
        %vm582 = vcmp.ge.s32.totalorder %v581, 0
        %vm583 = vcmp.lt.s32.totalorder %v581, 256
        %vm584 = vmand %vm582, %vm583
        %585 = vst.msk [vmem:[#allocation2] sm:$0x3] %vm584, %v579
      $region32: #{miccai2018_loss.4} parent=27 // pred_fallthru
        _
      %v586 = vld [vmem:[#allocation2] sm:$0x3]
      %v588 = vperm.slane %v586, 0
      %v589 = vperm.slane %v586, 1
      %v592 = vsub.f32 %v220, %v588
      %v593 = vsub.f32 %v221, %v589
      %v594 = vmul.f32 %v592, %v592
      %v595 = vmul.f32 %v593, %v593
      %v596 = vsel %vm362, %v594, 0.0
      %v597 = vsel %vm362, %v595, 0.0
      %v598 = vadd.f32 %v596, %v597
      %599 = vadd.xlane.f32.xlu0 %v598
      %v600 = vpop.xlane.xlu0 %599
      %v601 = vrot.slane %v600, 4
      %v602 = vadd.f32 %v600, %v601
      %v603 = vrot.slane %v602, 2
      %v604 = vadd.f32 %v602, %v603
      %v605 = vrot.slane %v604, 1
      %v606 = vadd.f32 %v604, %v605
      %s607 = vtos %v606
      %s608 = sadd.f32 %s571, %s607
      %611 = vst [vmem:[#allocation1] sm:$0xff] %v222
      %612 = vst [vmem:[#allocation1 + $0x9] sm:$0xff] %v223
      %s613 = scalar_lea.vmem [#allocation1], 3
      %v614 = vld [vmem:[%s613] ss:$9 sm:$0xff]
      %v616 = vlaneseq
      %vm617 = vcmp.ge.s32.totalorder %v616, 0
      %vm618 = vcmp.lt.s32.totalorder %v616, 256
      %vm619 = vmand %vm617, %vm618
      %620 = vst.msk [vmem:[#allocation2] sm:$0x3] %vm619, %v614
      %vm621 = vcmp.eq.s32.totalorder %v229, 0
      %v622 = vstv %s324
      %v623 = vsel %vm621, %v622, 0.0
      %vm624 = vcmp.eq.s32.totalorder %v229, 1
      %v625 = vstv %s426
      %v626 = vsel %vm624, %v625, %v623
      %vm627 = vcmp.eq.s32.totalorder %v229, 2
      %v628 = vstv %s288
      %v629 = vsel %vm627, %v628, %v626
      %vm630 = vcmp.eq.s32.totalorder %v229, 3
      %v631 = vstv %s608
      %v632 = vsel %vm630, %v631, %v629
      %vm633 = vcmp.eq.s32.totalorder %v229, 4
      %v634 = vstv %s515
      %v635 = vsel %vm633, %v634, %v632
      %vm636 = vcmp.eq.s32.totalorder %v229, 5
      %v637 = vstv %s471
      %v638 = vsel %vm636, %v637, %v635
      %639 = vst [vmem:[%s219] sm:$0xff] %v638
      %p640 = scmp.lt.s32.totalorder %s17, 5
      %s641 = scalar_select %p640, %s17, 5
      %p642 = scmp.lt.s32.totalorder %s18, 0
      %s643 = scalar_select %p642, %s18, 0
      %s644 = sadd.s32 %s643, %s641
      %s645 = smul.addr %s644, 8
      %s646 = scalar_lea.vmem %s2, %s645
      // Predicated region
      $region33: #{miccai2018_loss.4} parent=27 // pred_check
        %p647 = pneg %p101
      $region34: #{miccai2018_loss.4} parent=27 // pred_check_branch
        %649 = sbr.rel (%p647) target = $region36
      $region35: #{miccai2018_loss.4} parent=27 // pred_region
        _
      $region36: #{miccai2018_loss.4} parent=27 // pred_fallthru
        _
    $region28: #{miccai2018_loss.4} parent=5 // pred_fallthru
      _
    %p650 = scmp.le.s32.totalorder 2, %s8
    // Predicated region
    $region37: #{miccai2018_loss.4} parent=5 // pred_check
      %p651 = pneg %p650
    $region38: #{miccai2018_loss.4} parent=5 // pred_check_branch
      %653 = sbr.rel (%p651) target = $region40
    $region39: #{miccai2018_loss.4} parent=5 // pred_region
      %s654 = ssub.s32 %s8, 2
      // Predicated region
      $region41: #{miccai2018_loss.4} parent=39 // pred_check
        %p655 = pneg %p107
      $region42: #{miccai2018_loss.4} parent=39 // pred_check_branch
        %657 = sbr.rel (%p655) target = $region44
      $region43: #{miccai2018_loss.4} parent=39 // pred_region
        %p658 = scmp.lt.s32.totalorder %s19, 5
        %s659 = scalar_select %p658, %s19, 5
        %p660 = scmp.lt.s32.totalorder %s20, 0
        %s661 = scalar_select %p660, %s20, 0
        %s662 = sadd.s32 %s661, %s659
        %s663 = smul.addr %s662, 8
        %s664 = scalar_lea.vmem %s2, %s663
      $region44: #{miccai2018_loss.4} parent=39 // pred_fallthru
        _
    $region40: #{miccai2018_loss.4} parent=5 // pred_fallthru
      _
  $region6: #{miccai2018_loss.4} parent=0 // loop_footer
    %s12 = sadd.s32 1, %s8
  $region7: #{miccai2018_loss.4} parent=0 // loop_footer_branch
    %7 = sbr.rel target = $region3
  $region8: #{miccai2018_loss.4} parent=0 // loop_exit
    _

// kernel: miccai2018_loss.5
$region0: #{miccai2018_loss.5}
  #allocation0 [shape = 'u32[]', space=smem, size = 0x4, offset = 0x4, fixed_abs, tag = 'smem constant byte address 0x4 - core index']
  #allocation1 [shape = 'u32[72,128]{1,0:T(1,128)}', space=vmem, size = 0x9000, scoped, tag = 'internal scratch']
  #allocation2 [shape = 'f32[1,64]{1,0:T(1,128)}', space=vmem, size = 0x200, scoped, tag = 'scratch operand']
  %s0 = inlined_call_operand.vmem [shape: f32[6,6,64], index: 0, kind: input, shape index: {}]
  %s1 = inlined_call_operand.vmem [shape: f32[6,6,64], index: 1, kind: input, shape index: {}]
  %s2 = inlined_call_operand.vmem [shape: f32[6,1,8,128], index: 2, kind: output, shape index: {}]
  %s3 = sld [smem:[#allocation0]]
  $region45: #{miccai2018_loss.5} parent=0
    _
  %s5 = ssub.s32 1, %s3
  %s6 = scalar_select 0, %s5, %s3
  loop: start=0, step=1, limit=8
  $region2: #{miccai2018_loss.5} parent=0 // loop_pre_header
    _
  $region3: #{miccai2018_loss.5} parent=0 // loop_header
    %s8 = sphi 0, %s12
    %p9 = scmp.ge.s32.totalorder %s8, 8
    %s15 = sphi 0, %s27
    %s16 = sphi 0, %s23
    %s17 = sphi 0, %s15
    %s18 = sphi 0, %s16
    %s19 = sphi 0, %s17
    %s20 = sphi 0, %s18
    %s32 = sphi 0, %s34
    %s35 = sphi 0, %s32
    %s36 = sphi 0, %s35
    %s52 = sphi 0, %s36
    %s60 = sphi 0, %s62
    %s63 = sphi 0, %s60
    %s64 = sphi 0, %s63
    %s80 = sphi 0, %s64
    %s88 = sphi 0, %s90
    %s91 = sphi 0, %s88
    %s92 = sphi 0, %s91
    %s108 = sphi 0, %s92
  $region4: #{miccai2018_loss.5} parent=0 // loop_header_branch
    %11 = sbr.rel (%p9) target = $region8
  $region5: #{miccai2018_loss.5} parent=0 // loop_body
    %s13 = ssub.s32 %s8, 1
    %s14 = ssub.s32 %s8, 2
    %s21 = sadd.s32 1, %s16
    %p22 = scmp.ge.s32.totalorder %s21, 1
    %s23 = scalar_select %p22, 0, %s21
    %s24 = sadd.s32 1, %s15
    %s25 = scalar_select %p22, %s24, %s15
    %p26 = scmp.ge.s32.totalorder %s25, 6
    %s27 = scalar_select %p26, 0, %s25
    %s28 = ssub.s32 %s15, %s27
    %s29 = ssub.s32 %s16, %s23
    %s30 = sor.u32 %s28, %s29
    %p31 = scmp.eq.s32.totalorder %s30, 0
    %s33 = sadd.s32 %s32, 1
    %s34 = scalar_select %p31, %s32, %s33
    %p37 = pneg %p31
    %p38 = scmp.eq.s32.totalorder %s8, 5
    %p39 = por %p37, %p38
    %p40 = scmp.ne.s32.totalorder %s32, %s35
    %p41 = scmp.eq.s32.totalorder %s8, 0
    %p42 = por %p40, %p41
    %p43 = scmp.ne.s32.totalorder %s32, %s35
    %p44 = scmp.eq.s32.totalorder %s13, 5
    %p45 = por %p43, %p44
    %p46 = scmp.ne.s32.totalorder %s35, %s36
    %p47 = scmp.eq.s32.totalorder %s13, 0
    %p48 = por %p46, %p47
    %p49 = scmp.ne.s32.totalorder %s35, %s36
    %p50 = scmp.eq.s32.totalorder %s14, 5
    %p51 = por %p49, %p50
    %p53 = scmp.ne.s32.totalorder %s36, %s52
    %p54 = scmp.eq.s32.totalorder %s14, 0
    %p55 = por %p53, %p54
    %s56 = ssub.s32 %s15, %s27
    %s57 = ssub.s32 %s16, %s23
    %s58 = sor.u32 %s56, %s57
    %p59 = scmp.eq.s32.totalorder %s58, 0
    %s61 = sadd.s32 %s60, 1
    %s62 = scalar_select %p59, %s60, %s61
    %p65 = pneg %p59
    %p66 = scmp.eq.s32.totalorder %s8, 5
    %p67 = por %p65, %p66
    %p68 = scmp.ne.s32.totalorder %s60, %s63
    %p69 = scmp.eq.s32.totalorder %s8, 0
    %p70 = por %p68, %p69
    %p71 = scmp.ne.s32.totalorder %s60, %s63
    %p72 = scmp.eq.s32.totalorder %s13, 5
    %p73 = por %p71, %p72
    %p74 = scmp.ne.s32.totalorder %s63, %s64
    %p75 = scmp.eq.s32.totalorder %s13, 0
    %p76 = por %p74, %p75
    %p77 = scmp.ne.s32.totalorder %s63, %s64
    %p78 = scmp.eq.s32.totalorder %s14, 5
    %p79 = por %p77, %p78
    %p81 = scmp.ne.s32.totalorder %s64, %s80
    %p82 = scmp.eq.s32.totalorder %s14, 0
    %p83 = por %p81, %p82
    %s84 = ssub.s32 %s15, %s27
    %s85 = ssub.s32 %s16, %s23
    %s86 = sor.u32 %s84, %s85
    %p87 = scmp.eq.s32.totalorder %s86, 0
    %s89 = sadd.s32 %s88, 1
    %s90 = scalar_select %p87, %s88, %s89
    %p93 = pneg %p87
    %p94 = scmp.eq.s32.totalorder %s8, 5
    %p95 = por %p93, %p94
    %p96 = scmp.ne.s32.totalorder %s88, %s91
    %p97 = scmp.eq.s32.totalorder %s8, 0
    %p98 = por %p96, %p97
    %p99 = scmp.ne.s32.totalorder %s88, %s91
    %p100 = scmp.eq.s32.totalorder %s13, 5
    %p101 = por %p99, %p100
    %p102 = scmp.ne.s32.totalorder %s91, %s92
    %p103 = scmp.eq.s32.totalorder %s13, 0
    %p104 = por %p102, %p103
    %p105 = scmp.ne.s32.totalorder %s91, %s92
    %p106 = scmp.eq.s32.totalorder %s14, 5
    %p107 = por %p105, %p106
    %p109 = scmp.ne.s32.totalorder %s92, %s108
    %p110 = scmp.eq.s32.totalorder %s14, 0
    %p111 = por %p109, %p110
    %p112 = scmp.le.s32.totalorder 1, %s8
    %p113 = scmp.lt.s32.totalorder %s8, 7
    %p114 = pnand %p112, %p113
    %p115 = pneg %p114
    // Predicated region
    $region9: #{miccai2018_loss.5} parent=5 // pred_check
      _
    $region10: #{miccai2018_loss.5} parent=5 // pred_check_branch
      %117 = sbr.rel (%p114) target = $region12
    $region11: #{miccai2018_loss.5} parent=5 // pred_region
      %s118 = ssub.s32 %s8, 1
    $region12: #{miccai2018_loss.5} parent=5 // pred_fallthru
      _
    %p119 = scmp.lt.s32.totalorder %s8, 6
    // Predicated region
    $region13: #{miccai2018_loss.5} parent=5 // pred_check
      %p120 = pneg %p119
    $region14: #{miccai2018_loss.5} parent=5 // pred_check_branch
      %122 = sbr.rel (%p120) target = $region16
    $region15: #{miccai2018_loss.5} parent=5 // pred_region
      // Predicated region
      $region17: #{miccai2018_loss.5} parent=15 // pred_check
        %p123 = pneg %p42
      $region18: #{miccai2018_loss.5} parent=15 // pred_check_branch
        %125 = sbr.rel (%p123) target = $region20
      $region19: #{miccai2018_loss.5} parent=15 // pred_region
        %p126 = scmp.lt.s32.totalorder %s15, 5
        %s127 = scalar_select %p126, %s15, 5
        %p128 = scmp.lt.s32.totalorder %s16, 0
        %s129 = scalar_select %p128, %s16, 0
        %s130 = sadd.s32 %s129, %s127
        %s131 = smul.addr %s130, 8
        %s132 = scalar_lea.vmem %s0, %s131
      $region20: #{miccai2018_loss.5} parent=15 // pred_fallthru
        _
      // Predicated region
      $region21: #{miccai2018_loss.5} parent=15 // pred_check
        %p133 = pneg %p70
      $region22: #{miccai2018_loss.5} parent=15 // pred_check_branch
        %135 = sbr.rel (%p133) target = $region24
      $region23: #{miccai2018_loss.5} parent=15 // pred_region
        %p136 = scmp.lt.s32.totalorder %s15, 5
        %s137 = scalar_select %p136, %s15, 5
        %p138 = scmp.lt.s32.totalorder %s16, 0
        %s139 = scalar_select %p138, %s16, 0
        %s140 = sadd.s32 %s139, %s137
        %s141 = smul.addr %s140, 8
        %s142 = scalar_lea.vmem %s1, %s141
      $region24: #{miccai2018_loss.5} parent=15 // pred_fallthru
        _
    $region16: #{miccai2018_loss.5} parent=5 // pred_fallthru
      _
    %p143 = scmp.le.s32.totalorder 1, %s8
    %p144 = scmp.lt.s32.totalorder %s8, 7
    %p145 = pnand %p143, %p144
    %p146 = pneg %p145
    // Predicated region
    $region25: #{miccai2018_loss.5} parent=5 // pred_check
      _
    $region26: #{miccai2018_loss.5} parent=5 // pred_check_branch
      %148 = sbr.rel (%p145) target = $region28
    $region27: #{miccai2018_loss.5} parent=5 // pred_region
      %s149 = ssub.s32 %s8, 1
      %p150 = scmp.lt.s32.totalorder %s17, 5
      %s151 = scalar_select %p150, %s17, 5
      %p152 = scmp.lt.s32.totalorder %s18, 0
      %s153 = scalar_select %p152, %s18, 0
      %s154 = sadd.s32 %s153, %s151
      %s155 = smul.addr %s154, 8
      %s156 = scalar_lea.vmem %s0, %s155
      %p157 = pneg %p48
      %p158 = pneg %p45
      %p159 = scmp.lt.s32.totalorder %s17, 5
      %s160 = scalar_select %p159, %s17, 5
      %p161 = scmp.lt.s32.totalorder %s18, 0
      %s162 = scalar_select %p161, %s18, 0
      %s163 = sadd.s32 %s162, %s160
      %s164 = smul.addr %s163, 8
      %s165 = scalar_lea.vmem %s1, %s164
      %p166 = pneg %p76
      %p167 = pneg %p73
      %p168 = pneg %p104
      %p169 = pneg %p101
      %p170 = scmp.lt.s32.totalorder %s17, 5
      %s171 = scalar_select %p170, %s17, 5
      %p172 = scmp.lt.s32.totalorder %s18, 0
      %s173 = scalar_select %p172, %s18, 0
      %s174 = sadd.s32 %s173, %s171
      %s175 = smul.addr %s174, 8
      %s176 = scalar_lea.vmem %s2, %s175
      %p177 = scmp.lt.s32.totalorder %s17, 5
      %s178 = scalar_select %p177, %s17, 5
      %p179 = scmp.lt.s32.totalorder %s18, 0
      %s180 = scalar_select %p179, %s18, 0
      %s181 = sadd.s32 %s180, %s178
      %s182 = smul.addr %s181, 8
      %s183 = scalar_lea.vmem %s0, %s182
      %p184 = scmp.lt.s32.totalorder %s17, 5
      %s185 = scalar_select %p184, %s17, 5
      %p186 = scmp.lt.s32.totalorder %s18, 0
      %s187 = scalar_select %p186, %s18, 0
      %s188 = sadd.s32 %s187, %s185
      %s189 = smul.addr %s188, 8
      %s190 = scalar_lea.vmem %s1, %s189
      %p191 = scmp.lt.s32.totalorder %s17, 5
      %s192 = scalar_select %p191, %s17, 5
      %p193 = scmp.lt.s32.totalorder %s18, 0
      %s194 = scalar_select %p193, %s18, 0
      %s195 = sadd.s32 %s194, %s192
      %s196 = smul.addr %s195, 8
      %s197 = scalar_lea.vmem %s2, %s196
      %v198 = vld [vmem:[%s183] sm:$0x3f]
      %v199 = vld [vmem:[%s190] sm:$0x3f]
      %v200 = vlaneseq
      %v201 = vshrl.u32 %v200, 7
      %s202 = smul.u32 %s18, 6
      %v203 = vstv %s202
      %v204 = vadd.s32 %v201, %v203
      %v205 = vlaneseq
      %v206 = vand.u32 %v205, 127
      %vm207 = vcmp.lt.s32.totalorder %v206, 0
      %v208 = vsub.s32 0, %v206
      %v209 = vsel %vm207, %v208, %v206
      %v210 = vshrl.u32 %v209, 3
      %v211 = vand.u32 %v209, 7
      %v212 = vsub.s32 0, %v211
      %v213 = vsel %vm207, %v212, %v211
      %vm214 = vcmp.ne.s32.totalorder %v213, 0
      %vm215 = vcmp.lt.s32.totalorder %v213, 0
      %vm216 = vmand %vm215, %vm214
      %v217 = vadd.s32 %v213, 8
      %v218 = vsel %vm216, %v217, %v213
      %v219 = vmul.f32 %v199, %v199
      %v220 = vlog2.pop %v219
      %v221 = vmul.f32 %v220, 0.6931472
      %vm222 = vcmask 521216
      %v223 = vsel %vm222, %v221, 0.0
      %224 = vadd.xlane.f32.xlu0 %v223
      %v225 = vpop.xlane.xlu0 %224
      %v226 = vrot.slane %v225, 4
      %v227 = vadd.f32 %v225, %v226
      %v228 = vrot.slane %v227, 2
      %v229 = vadd.f32 %v227, %v228
      %v230 = vrot.slane %v229, 1
      %v231 = vadd.f32 %v229, %v230
      %s232 = vtos %v231
      %v233 = vsel %vm222, %v219, 0.0
      %234 = vadd.xlane.f32.xlu0 %v233
      %v235 = vpop.xlane.xlu0 %234
      %v236 = vrot.slane %v233, 4
      %v237 = vadd.f32 %v233, %v236
      %v238 = vrot.slane %v237, 2
      %v239 = vadd.f32 %v237, %v238
      %v240 = vrot.slane %v239, 1
      %v241 = vadd.f32 %v239, %v240
      %vm242 = vcmask 5120
      %v243 = vsel %vm242, %v235, 0.0
      %244 = vadd.xlane.f32.xlu0 %v243
      %v245 = vpop.xlane.xlu0 %244
      %v246 = vrot.slane %v245, 4
      %v247 = vadd.f32 %v245, %v246
      %v248 = vrot.slane %v247, 2
      %v249 = vadd.f32 %v247, %v248
      %v250 = vrot.slane %v249, 1
      %v251 = vadd.f32 %v249, %v250
      %s252 = vtos %v251
      %vm253 = vcmp.eq.s32.totalorder %v204, 0
      %v254 = vsel %vm253, %v235, 0.0
      %v255 = vsel %vm242, %v254, 0.0
      %256 = vadd.xlane.f32.xlu0 %v255
      %v257 = vpop.xlane.xlu0 %256
      %v258 = vrot.slane %v257, 4
      %v259 = vadd.f32 %v257, %v258
      %v260 = vrot.slane %v259, 2
      %v261 = vadd.f32 %v259, %v260
      %v262 = vrot.slane %v261, 1
      %v263 = vadd.f32 %v261, %v262
      %s264 = vtos %v263
      %vm265 = vcmp.eq.s32.totalorder %v204, 5
      %v266 = vsel %vm265, %v235, 0.0
      %v267 = vsel %vm242, %v266, 0.0
      %268 = vadd.xlane.f32.xlu0 %v267
      %v269 = vpop.xlane.xlu0 %268
      %v270 = vrot.slane %v269, 4
      %v271 = vadd.f32 %v269, %v270
      %v272 = vrot.slane %v271, 2
      %v273 = vadd.f32 %v271, %v272
      %v274 = vrot.slane %v273, 1
      %v275 = vadd.f32 %v273, %v274
      %s276 = vtos %v275
      %s277 = sadd.f32 %s264, %s276
      %vm278 = vcmp.lt.s32.totalorder %v206, 8
      %v279 = vsel %vm278, %v241, 0.0
      %vm280 = vcmask 516096
      %v281 = vsel %vm280, %v279, 0.0
      %282 = vadd.xlane.f32.xlu0 %v281
      %v283 = vpop.xlane.xlu0 %282
      %v284 = vrot.slane %v283, 4
      %v285 = vadd.f32 %v283, %v284
      %v286 = vrot.slane %v285, 2
      %v287 = vadd.f32 %v285, %v286
      %v288 = vrot.slane %v287, 1
      %v289 = vadd.f32 %v287, %v288
      %s290 = vtos %v289
      %vm291 = vcmp.ge.s32.totalorder %v206, 56
      %v292 = vsel %vm291, %v241, 0.0
      %v293 = vsel %vm280, %v292, 0.0
      %294 = vadd.xlane.f32.xlu0 %v293
      %v295 = vpop.xlane.xlu0 %294
      %v296 = vrot.slane %v295, 4
      %v297 = vadd.f32 %v295, %v296
      %v298 = vrot.slane %v297, 2
      %v299 = vadd.f32 %v297, %v298
      %v300 = vrot.slane %v299, 1
      %v301 = vadd.f32 %v299, %v300
      %s302 = vtos %v301
      %s303 = sadd.f32 %s290, %s302
      %vm304 = vcmp.eq.s32.totalorder %v218, 0
      %v305 = vsel %vm304, %v241, 0.0
      %v306 = vsel %vm280, %v305, 0.0
      %307 = vadd.xlane.f32.xlu0 %v306
      %v308 = vpop.xlane.xlu0 %307
      %v309 = vrot.slane %v308, 4
      %v310 = vadd.f32 %v308, %v309
      %v311 = vrot.slane %v310, 2
      %v312 = vadd.f32 %v310, %v311
      %v313 = vrot.slane %v312, 1
      %v314 = vadd.f32 %v312, %v313
      %s315 = vtos %v314
      %vm316 = vcmp.eq.s32.totalorder %v218, 7
      %v317 = vsel %vm316, %v241, 0.0
      %v318 = vsel %vm280, %v317, 0.0
      %319 = vadd.xlane.f32.xlu0 %v318
      %v320 = vpop.xlane.xlu0 %319
      %v321 = vrot.slane %v320, 4
      %v322 = vadd.f32 %v320, %v321
      %v323 = vrot.slane %v322, 2
      %v324 = vadd.f32 %v322, %v323
      %v325 = vrot.slane %v324, 1
      %v326 = vadd.f32 %v324, %v325
      %s327 = vtos %v326
      %s328 = sadd.f32 %s315, %s327
      %s329 = sadd.f32 %s277, %s303
      %s330 = sadd.f32 %s329, %s328
      %vm331 = vcmask 1048064
      %332 = vrot.lane.b32.xlu0 %v198, 64
      %v333 = vpop.permute.xlu0 %332
      %v334 = vsel %vm331, %v333, %v198
      %335 = vrot.lane.b32.xlu0 %v334, 64
      %v336 = vpop.permute.xlu0 %335
      %v337 = vsel %vm331, %v336, %v198
      %339 = vrot.lane.b32.xlu0 %v337, 65
      %v340 = vpop.permute.xlu0 %339
      %v342 = vsub.f32 %v198, %v340
      %v343 = vmul.f32 %v342, %v342
      %vm344 = vcmp.ne.s32.totalorder %v218, 0
      %v345 = vsel %vm344, 1, 0
      %vm346 = vcmp.eq.s32.totalorder %v345, 1
      %v347 = vsel %vm346, %v343, 0.0
      %v348 = vsel %vm222, %v347, 0.0
      %349 = vadd.xlane.f32.xlu0 %v348
      %v350 = vpop.xlane.xlu0 %349
      %v351 = vrot.slane %v350, 4
      %v352 = vadd.f32 %v350, %v351
      %v353 = vrot.slane %v352, 2
      %v354 = vadd.f32 %v352, %v353
      %v355 = vrot.slane %v354, 1
      %v356 = vadd.f32 %v354, %v355
      %s357 = vtos %v356
      %358 = vrot.lane.b32.xlu0 %v337, 72
      %v359 = vpop.permute.xlu0 %358
      %v361 = vsub.f32 %v198, %v359
      %v362 = vmul.f32 %v361, %v361
      %vm363 = vcmp.ge.s32.totalorder %v206, 8
      %v364 = vsel %vm363, 1, 0
      %vm365 = vcmp.eq.s32.totalorder %v364, 1
      %v366 = vsel %vm365, %v362, 0.0
      %v367 = vsel %vm222, %v366, 0.0
      %368 = vadd.xlane.f32.xlu0 %v367
      %v369 = vpop.xlane.xlu0 %368
      %v370 = vrot.slane %v369, 4
      %v371 = vadd.f32 %v369, %v370
      %v372 = vrot.slane %v371, 2
      %v373 = vadd.f32 %v371, %v372
      %v374 = vrot.slane %v373, 1
      %v375 = vadd.f32 %v373, %v374
      %s376 = vtos %v375
      %vm377 = vcmask 1047558
      %v378 = vrot.slane %v198, 2
      %v379 = vsel %vm377, %v378, %v198
      %v380 = vrot.slane %v379, 2
      %v381 = vsel %vm377, %v380, %v198
      %vm384 = vcmask 1042432
      %v385 = vrot.slane %v381, 5
      %v386 = vrot.slane %v380, 5
      %v387 = vsel %vm384, %v385, %v386
      %v389 = vsub.f32 %v198, %v387
      %vm390 = vcmp.ge.s32.totalorder %v201, 1
      %v391 = vmul.f32 %v389, %v389
      %v392 = vsel %vm390, 1, 0
      %vm393 = vcmp.eq.s32.totalorder %v392, 1
      %v394 = vsel %vm393, %v391, 0.0
      %v395 = vsel %vm222, %v394, 0.0
      %396 = vadd.xlane.f32.xlu0 %v395
      %v397 = vpop.xlane.xlu0 %396
      %v398 = vrot.slane %v397, 4
      %v399 = vadd.f32 %v397, %v398
      %v400 = vrot.slane %v399, 2
      %v401 = vadd.f32 %v399, %v400
      %v402 = vrot.slane %v401, 1
      %v403 = vadd.f32 %v401, %v402
      %s404 = vtos %v403
      %p405 = scmp.eq.s32.totalorder %s18, 0
      // Predicated region
      $region29: #{miccai2018_loss.5} parent=27 // pred_check
        %p406 = pneg %p405
      $region30: #{miccai2018_loss.5} parent=27 // pred_check_branch
        %408 = sbr.rel (%p406) target = $region32
      $region31: #{miccai2018_loss.5} parent=27 // pred_region
        %409 = vst.msk [vmem:[#allocation2] sm:$0x1] %vm280, %v198
      $region32: #{miccai2018_loss.5} parent=27 // pred_fallthru
        _
      %v410 = vld [vmem:[#allocation2] sm:$0x1]
      %v411 = vsub.f32 %v198, %v410
      %v412 = vmul.f32 %v411, %v411
      %v413 = vsel %vm280, %v412, 0.0
      %414 = vadd.xlane.f32.xlu0 %v413
      %v415 = vpop.xlane.xlu0 %414
      %v416 = vrot.slane %v415, 4
      %v417 = vadd.f32 %v415, %v416
      %v418 = vrot.slane %v417, 2
      %v419 = vadd.f32 %v417, %v418
      %v420 = vrot.slane %v419, 1
      %v421 = vadd.f32 %v419, %v420
      %s422 = vtos %v421
      %s423 = sadd.f32 %s404, %s422
      %vm424 = vcmask 521221
      %425 = vst.msk [vmem:[#allocation2 - $0x5] sm:$0x20] %vm424, %v198
      %vm426 = vcmp.eq.s32.totalorder %v201, 0
      %v427 = vstv %s252
      %v428 = vsel %vm426, %v427, 0.0
      %vm429 = vcmp.eq.s32.totalorder %v201, 1
      %v430 = vstv %s330
      %v431 = vsel %vm429, %v430, %v428
      %vm432 = vcmp.eq.s32.totalorder %v201, 2
      %v433 = vstv %s232
      %v434 = vsel %vm432, %v433, %v431
      %vm435 = vcmp.eq.s32.totalorder %v201, 3
      %v436 = vstv %s423
      %v437 = vsel %vm435, %v436, %v434
      %vm438 = vcmp.eq.s32.totalorder %v201, 4
      %v439 = vstv %s376
      %v440 = vsel %vm438, %v439, %v437
      %vm441 = vcmp.eq.s32.totalorder %v201, 5
      %v442 = vstv %s357
      %v443 = vsel %vm441, %v442, %v440
      %444 = vst [vmem:[%s197] sm:$0xff] %v443
      %p445 = scmp.lt.s32.totalorder %s17, 5
      %s446 = scalar_select %p445, %s17, 5
      %p447 = scmp.lt.s32.totalorder %s18, 0
      %s448 = scalar_select %p447, %s18, 0
      %s449 = sadd.s32 %s448, %s446
      %s450 = smul.addr %s449, 8
      %s451 = scalar_lea.vmem %s2, %s450
      // Predicated region
      $region33: #{miccai2018_loss.5} parent=27 // pred_check
        %p452 = pneg %p101
      $region34: #{miccai2018_loss.5} parent=27 // pred_check_branch
        %454 = sbr.rel (%p452) target = $region36
      $region35: #{miccai2018_loss.5} parent=27 // pred_region
        _
      $region36: #{miccai2018_loss.5} parent=27 // pred_fallthru
        _
    $region28: #{miccai2018_loss.5} parent=5 // pred_fallthru
      _
    %p455 = scmp.le.s32.totalorder 2, %s8
    // Predicated region
    $region37: #{miccai2018_loss.5} parent=5 // pred_check
      %p456 = pneg %p455
    $region38: #{miccai2018_loss.5} parent=5 // pred_check_branch
      %458 = sbr.rel (%p456) target = $region40
    $region39: #{miccai2018_loss.5} parent=5 // pred_region
      %s459 = ssub.s32 %s8, 2
      // Predicated region
      $region41: #{miccai2018_loss.5} parent=39 // pred_check
        %p460 = pneg %p107
      $region42: #{miccai2018_loss.5} parent=39 // pred_check_branch
        %462 = sbr.rel (%p460) target = $region44
      $region43: #{miccai2018_loss.5} parent=39 // pred_region
        %p463 = scmp.lt.s32.totalorder %s19, 5
        %s464 = scalar_select %p463, %s19, 5
        %p465 = scmp.lt.s32.totalorder %s20, 0
        %s466 = scalar_select %p465, %s20, 0
        %s467 = sadd.s32 %s466, %s464
        %s468 = smul.addr %s467, 8
        %s469 = scalar_lea.vmem %s2, %s468
      $region44: #{miccai2018_loss.5} parent=39 // pred_fallthru
        _
    $region40: #{miccai2018_loss.5} parent=5 // pred_fallthru
      _
  $region6: #{miccai2018_loss.5} parent=0 // loop_footer
    %s12 = sadd.s32 1, %s8
  $region7: #{miccai2018_loss.5} parent=0 // loop_footer_branch
    %7 = sbr.rel target = $region3
  $region8: #{miccai2018_loss.5} parent=0 // loop_exit
    _

// kernel: miccai2018_loss.3
$region0: #{miccai2018_loss.3}
  #allocation0 [shape = 'u32[]', space=smem, size = 0x4, offset = 0x4, fixed_abs, tag = 'smem constant byte address 0x4 - core index']
  #allocation1 [shape = 'u32[72,128]{1,0:T(1,128)}', space=vmem, size = 0x9000, scoped, tag = 'internal scratch']
  %s0 = inlined_call_operand.vmem [shape: f32[24,256], index: 0, kind: input, shape index: {}]
  %s1 = inlined_call_operand.vmem [shape: f32[24,256], index: 1, kind: input, shape index: {}]
  %s2 = inlined_call_operand.vmem [shape: f32[1,8,128], index: 2, kind: output, shape index: {}]
  %s3 = sld [smem:[#allocation0]]
  $region18: #{miccai2018_loss.3} parent=0
    _
  %s5 = ssub.s32 1, %s3
  %s6 = scalar_select 0, %s5, %s3
  // Predicated region
  $region2: #{miccai2018_loss.3} parent=0 // pred_check
    _
  $region3: #{miccai2018_loss.3} parent=0 // pred_check_branch
    %8 = sbr.rel (0) target = $region5
  $region4: #{miccai2018_loss.3} parent=0 // pred_region
    _
  $region5: #{miccai2018_loss.3} parent=0 // pred_fallthru
    _
  // Predicated region
  $region6: #{miccai2018_loss.3} parent=0 // pred_check
    _
  $region7: #{miccai2018_loss.3} parent=0 // pred_check_branch
    %10 = sbr.rel (0) target = $region9
  $region8: #{miccai2018_loss.3} parent=0 // pred_region
    _
  $region9: #{miccai2018_loss.3} parent=0 // pred_fallthru
    _
  %v11 = vld [vmem:[%s0] sm:$0xff]
  %v12 = vld [vmem:[%s0 + $0x8] sm:$0xff]
  %v13 = vld [vmem:[%s0 + $0x10] sm:$0xff]
  %v14 = vld [vmem:[%s0 + $0x18] sm:$0xff]
  %v15 = vld [vmem:[%s0 + $0x20] sm:$0xff]
  %v16 = vld [vmem:[%s0 + $0x28] sm:$0xff]
  %v17 = vld [vmem:[%s1] sm:$0xff]
  %v18 = vld [vmem:[%s1 + $0x8] sm:$0xff]
  %v19 = vld [vmem:[%s1 + $0x10] sm:$0xff]
  %v20 = vld [vmem:[%s1 + $0x18] sm:$0xff]
  %v21 = vld [vmem:[%s1 + $0x20] sm:$0xff]
  %v22 = vld [vmem:[%s1 + $0x28] sm:$0xff]
  %v23 = vsub.f32 %v11, %v17
  %v24 = vsub.f32 %v12, %v18
  %v25 = vsub.f32 %v13, %v19
  %v26 = vsub.f32 %v14, %v20
  %v27 = vsub.f32 %v15, %v21
  %v28 = vsub.f32 %v16, %v22
  %v29 = vmul.f32 %v23, %v23
  %v30 = vmul.f32 %v24, %v24
  %v31 = vmul.f32 %v25, %v25
  %v32 = vmul.f32 %v26, %v26
  %v33 = vmul.f32 %v27, %v27
  %v34 = vmul.f32 %v28, %v28
  %v35 = vadd.f32 %v29, %v30
  %v36 = vadd.f32 %v35, %v31
  %v37 = vadd.f32 %v36, %v32
  %v38 = vadd.f32 %v37, %v33
  %v39 = vadd.f32 %v38, %v34
  %40 = vadd.xlane.f32.xlu0 %v39
  %v41 = vpop.xlane.xlu0 %40
  %v42 = vrot.slane %v41, 4
  %v43 = vadd.f32 %v41, %v42
  %v44 = vrot.slane %v43, 2
  %v45 = vadd.f32 %v43, %v44
  %v46 = vrot.slane %v45, 1
  %v47 = vadd.f32 %v45, %v46
  %s48 = vtos %v47
  %v49 = vstv %s48
  %50 = vst [vmem:[%s2] sm:$0xff] %v49
  // Predicated region
  $region10: #{miccai2018_loss.3} parent=0 // pred_check
    _
  $region11: #{miccai2018_loss.3} parent=0 // pred_check_branch
    %52 = sbr.rel (0) target = $region13
  $region12: #{miccai2018_loss.3} parent=0 // pred_region
    _
  $region13: #{miccai2018_loss.3} parent=0 // pred_fallthru
    _
  // Predicated region
  $region14: #{miccai2018_loss.3} parent=0 // pred_check
    _
  $region15: #{miccai2018_loss.3} parent=0 // pred_check_branch
    %54 = sbr.rel (0) target = $region17
  $region16: #{miccai2018_loss.3} parent=0 // pred_region
    _
  $region17: #{miccai2018_loss.3} parent=0 // pred_fallthru
    _

</llo_original>
